<compile_context>
chip_gen: v5e
topology: v5e:2x2
jax: 0.10.0
libtpu: 0.0.40
codegen_flags: <defaults>
</compile_context>

<pallas_src>
import jax
import jax.numpy as jnp
from jax.experimental import pallas as pl
from jax.experimental.pallas import tpu as pltpu

_HAS_INKERNEL_PRNG = hasattr(pltpu, "prng_seed") and hasattr(pltpu, "stateful_normal")


# ----------------------------------------------------------------------------
# Kernel helpers
# ----------------------------------------------------------------------------
def _accumulate_partial(sq, t_idx, out_ref):
    """Accumulate sum(sq) into the per-batch lane-dense (1,1,128) accumulator."""

    @pl.when(t_idx == 0)
    def _init():
        out_ref[...] = jnp.zeros_like(out_ref)

    c, t = sq.shape
    if t % 128 == 0:
        # Lane-dense partial: reduce sublanes + lane-chunks, keep 128 lanes.
        p = sq.reshape(c, t // 128, 128).sum(axis=0).sum(axis=0)  # (128,)
        out_ref[...] += p[None, None, :]
    else:
        # Odd lane count: scalar partial, added to lane 0 only.
        lane0 = jax.lax.broadcasted_iota(jnp.int32, (1, 1, 128), 2) == 0
        out_ref[...] += jnp.where(lane0, jnp.sum(sq), 0.0)


def _model_and_mse(x, noise, sab, scab, w_t, cemb, tvec, t_idx, out_ref):
    """Noising + synthetic noise predictor + partial MSE for one (C, T) tile."""
    # q(x_t | x_0): sqrt(alphaBar)*x + sqrt(1-alphaBar)*eps        (VPU, f32)
    noised = sab * x + scab * noise                                 # (C, T)

    # Synthetic model: 1x1 conv over channels on the MXU.
    h = jnp.dot(w_t, noised, preferred_element_type=jnp.float32)    # (C, T)
    h = (h + cemb) * (1.0 + tvec)                                   # cemb/tvec (C,1)

    d = noise - h
    _accumulate_partial(d * d, t_idx, out_ref)


def _ddpm_kernel_gen_noise(seed_ref, sab_ref, scab_ref, x_ref, w_ref,
                           cemb_ref, tvec_ref, out_ref):
    """Path A: noise generated in-kernel (no HBM round trip for eps)."""
    b = pl.program_id(0)
    t = pl.program_id(1)
    n_t = pl.num_programs(1)

    # Distinct stream per (batch, HW-tile) block -> independent of core mapping.
    pltpu.prng_seed(seed_ref[0] + b * n_t + t)

    x = x_ref[0]                                                    # (C, T)
    noise = pltpu.stateful_normal(x.shape, jnp.float32)             # eps ~ N(0,1)

    _model_and_mse(x, noise, sab_ref[b], scab_ref[b], w_ref[...],
                   cemb_ref[0], tvec_ref[0], t, out_ref)


def _ddpm_kernel_ext_noise(sab_ref, scab_ref, x_ref, noise_ref, w_ref,
                           cemb_ref, tvec_ref, out_ref):
    """Path B fallback: noise materialized in HBM by the wrapper."""
    b = pl.program_id(0)
    t = pl.program_id(1)

    x = x_ref[0]                                                    # (C, T)
    noise = noise_ref[0]                                            # (C, T)

    _model_and_mse(x, noise, sab_ref[b], scab_ref[b], w_ref[...],
                   cemb_ref[0], tvec_ref[0], t, out_ref)


# ----------------------------------------------------------------------------
# Wrapper (mirrors DDPM.forward)
# ----------------------------------------------------------------------------
def ddpm_forward(x, class_labels, key, params, betas_range, num_timesteps,
                 dropout_rate, num_classes):
    """Mirrors DDPM.forward(x, classLabels). Returns scalar MSE loss."""
    B, C, H, W = x.shape
    HW = H * W
    n_elems = B * C * HW

    # --- noise schedule (glue; matches torch.linspace / cumsum(log) math) ---
    betas = jnp.linspace(betas_range[0], betas_range[1], num_timesteps + 1,
                         dtype=jnp.float32)
    alphas = 1.0 - betas
    alpha_bar = jnp.exp(jnp.cumsum(jnp.log(alphas)))
    sqrt_comp_alpha_bar = jnp.sqrt(1.0 - alpha_bar)

    # --- random draws (classMask, timesteps) ---
    k_mask, k_t, k_noise, k_seed = jax.random.split(key, 4)
    class_mask = jax.random.bernoulli(
        k_mask, dropout_rate, class_labels.shape).astype(jnp.float32)
    random_times = jax.random.randint(k_t, (B,), 1, num_timesteps + 1)

    sab = jnp.sqrt(alpha_bar[random_times]).astype(jnp.float32)         # (B,)
    scab = sqrt_comp_alpha_bar[random_times].astype(jnp.float32)        # (B,)

    # --- synthetic model conditioning (gathers are glue) ---
    w, class_emb_table, time_proj = params
    w_t = jnp.asarray(w, jnp.float32).T                                 # (C_out, C_in), pre-transposed
    cemb = (class_emb_table[class_labels] *
            (1.0 - class_mask)[:, None]).astype(jnp.float32).reshape(B, C, 1)
    tvec = (time_proj[None, :] *
            (random_times.astype(jnp.float32) / num_timesteps)[:, None]
            ).astype(jnp.float32).reshape(B, C, 1)

    x_f = x.reshape(B, C, HW).astype(jnp.float32)

    # --- HW tile: largest lane-multiple divisor (target 512-2048 lanes) ---
    tile_hw = HW
    for cand in (2048, 1024, 512, 256, 128):
        if HW % cand == 0:
            tile_hw = cand
            break
    n_t = HW // tile_hw
    grid = (B, n_t)

    x_spec = pl.BlockSpec((1, C, tile_hw), lambda b, t: (b, 0, t))
    w_spec = pl.BlockSpec((C, C), lambda b, t: (0, 0))
    vec_spec = pl.BlockSpec((1, C, 1), lambda b, t: (b, 0, 0))
    smem_spec = pl.BlockSpec(memory_space=pltpu.MemorySpace.SMEM)
    out_spec = pl.BlockSpec((1, 1, 128), lambda b, t: (b, 0, 0))

    flops = 2 * B * C * C * HW + 10 * n_elems

    def _run(kernel, operands, in_specs, n_hbm_tensors):
        bytes_accessed = 4 * (n_hbm_tensors * n_elems + w_t.size + cemb.size
                              + tvec.size + B * 128)
        return pl.pallas_call(
            kernel,
            out_shape=jax.ShapeDtypeStruct((B, 1, 128), jnp.float32),
            grid=grid,
            in_specs=in_specs,
            out_specs=out_spec,
            compiler_params=pltpu.CompilerParams(
                dimension_semantics=("parallel", "arbitrary")),
            cost_estimate=pl.CostEstimate(flops=int(flops), transcendentals=0,
                                          bytes_accessed=int(bytes_accessed)),
        )(*operands)

    partials = None
    if _HAS_INKERNEL_PRNG:
        try:
            seed = jax.random.randint(k_seed, (1,), 0, 2**31 - 1,
                                      dtype=jnp.int32)
            partials = _run(
                _ddpm_kernel_gen_noise,
                (seed, sab, scab, x_f, w_t, cemb, tvec),
                [smem_spec, smem_spec, smem_spec, x_spec, w_spec, vec_spec,
                 vec_spec],
                n_hbm_tensors=1)
            jax.block_until_ready(partials)
        except Exception:  # pragma: no cover - defensive fallback
            partials = None

    if partials is None:
        # TODO(synk): fallback path materializes eps in HBM (extra write+read
        # of B*C*HW floats) when the in-kernel PRNG API is unavailable.
        noise = jax.random.normal(k_noise, (B, C, HW), dtype=jnp.float32)
        partials = _run(
            _ddpm_kernel_ext_noise,
            (sab, scab, x_f, noise, w_t, cemb, tvec),
            [smem_spec, smem_spec, x_spec, x_spec, w_spec, vec_spec, vec_spec],
            n_hbm_tensors=2)

    # nn.MSELoss(mean): final cross-block sum + divide in the wrapper.
    return jnp.sum(partials) / n_elems


if __name__ == "__main__":
    # Small, deterministic configuration.
    B, C, H, W = 2, 4, 16, 16
    num_timesteps = 400
    num_classes = 10
    dropout_rate = 0.1
    betas_range = (1e-4, 0.02)

    key = jax.random.PRNGKey(0)
    k_x, k_lbl, k_w, k_emb, k_tp, k_fwd = jax.random.split(key, 6)

    x = jax.random.normal(k_x, (B, C, H, W), dtype=jnp.float32)
    class_labels = jax.random.randint(k_lbl, (B,), 0, num_classes)

    # Deterministic synthetic-model parameters.
    w = 0.1 * jax.random.normal(k_w, (C, C), dtype=jnp.float32)          # 1x1 conv
    class_emb_table = 0.1 * jax.random.normal(k_emb, (num_classes, C),
                                              dtype=jnp.float32)
    time_proj = 0.1 * jax.random.normal(k_tp, (C,), dtype=jnp.float32)
    params = (w, class_emb_table, time_proj)

    loss = ddpm_forward(x, class_labels, k_fwd, params, betas_range,
                        num_timesteps, dropout_rate, num_classes)
    jax.block_until_ready(loss)
    assert loss.shape == () and bool(jnp.isfinite(loss))
    print("KERNEL_OK")
</pallas_src>

<mosaic_0001>
module attributes {stable_mosaic.version = 11 : i64} {
  func.func @_ddpm_kernel_gen_noise(%arg0: i32, %arg1: i32, %arg2: memref<1xi32, #tpu.memory_space<smem>>, %arg3: memref<2xf32, #tpu.memory_space<smem>>, %arg4: memref<2xf32, #tpu.memory_space<smem>>, %arg5: memref<1x4x256xf32, #tpu.memory_space<vmem>>, %arg6: memref<4x4xf32, #tpu.memory_space<vmem>>, %arg7: memref<1x4x1xf32, #tpu.memory_space<vmem>>, %arg8: memref<1x4x1xf32, #tpu.memory_space<vmem>>, %arg9: memref<1x1x128xf32, #tpu.memory_space<vmem>>) attributes {dimension_semantics = [#tpu.dimension_semantics<parallel>, #tpu.dimension_semantics<arbitrary>], iteration_bounds = array<i64: 2, 1>, scalar_prefetch = 0 : i64, scratch_operands = 0 : i64, tpu.core_type = #tpu.core_type<tc>, window_params = [{transform_indices = @transform_0, window_bounds = array<i64: 1>}, {transform_indices = @transform_1, window_bounds = array<i64: 2>}, {transform_indices = @transform_2, window_bounds = array<i64: 2>}, {transform_indices = @transform_3, window_bounds = array<i64: 1, 4, 256>}, {pipeline_mode = #tpu.pipeline_mode<synchronous>, transform_indices = @transform_4, window_bounds = array<i64: 4, 4>}, {transform_indices = @transform_5, window_bounds = array<i64: 1, 4, 1>}, {transform_indices = @transform_6, window_bounds = array<i64: 1, 4, 1>}, {transform_indices = @transform_7, window_bounds = array<i64: 1, 1, 128>}]} {
    %c0 = arith.constant 0 : index
    %0 = memref.load %arg2[%c0] : memref<1xi32, #tpu.memory_space<smem>>
    %c1_i32 = arith.constant 1 : i32
    %1 = arith.muli %arg0, %c1_i32 : i32
    %2 = arith.addi %0, %1 : i32
    %3 = arith.addi %2, %arg1 : i32
    "tpu.prng_set_seed_32"(%3) : (i32) -> ()
    %c0_0 = arith.constant 0 : index
    %c0_1 = arith.constant 0 : index
    %c0_2 = arith.constant 0 : index
    %4 = vector.load %arg5[%c0_0, %c0_1, %c0_2] : memref<1x4x256xf32, #tpu.memory_space<vmem>>, vector<1x4x256xf32>
    %5 = vector.shape_cast %4 : vector<1x4x256xf32> to vector<4x256xf32>
    %c0_i32 = arith.constant 0 : i32
    %c0_i32_3 = arith.constant 0 : i32
    %cst = arith.constant -0.99999994 : f32
    %cst_4 = arith.constant 1.000000e+00 : f32
    %6 = vector.broadcast %cst : f32 to vector<1x1xf32>
    %7 = vector.broadcast %cst_4 : f32 to vector<1x1xf32>
    %8 = "tpu.prng_random_bits"() : () -> vector<4x256xi32>
    %c9_i32 = arith.constant 9 : i32
    %9 = vector.broadcast %c9_i32 : i32 to vector<4x256xi32>
    %10 = arith.shrui %8, %9 : vector<4x256xi32>
    %c1065353216_i32 = arith.constant 1065353216 : i32
    %11 = vector.broadcast %c1065353216_i32 : i32 to vector<4x256xi32>
    %12 = arith.ori %10, %11 : vector<4x256xi32>
    %13 = tpu.bitcast %12 : vector<4x256xi32> -> vector<4x256xf32>
    %cst_5 = arith.constant 1.000000e+00 : f32
    %14 = vector.broadcast %cst_5 : f32 to vector<4x256xf32>
    %15 = arith.subf %13, %14 : vector<4x256xf32>
    %16 = arith.subf %7, %6 : vector<1x1xf32>
    %17 = vector.broadcast %16 : vector<1x1xf32> to vector<4x256xf32>
    %18 = arith.mulf %15, %17 : vector<4x256xf32>
    %19 = vector.broadcast %6 : vector<1x1xf32> to vector<4x256xf32>
    %20 = arith.addf %18, %19 : vector<4x256xf32>
    %21 = vector.broadcast %6 : vector<1x1xf32> to vector<4x256xf32>
    %22 = arith.maximumf %21, %20 : vector<4x256xf32>
    %cst_6 = arith.constant 0.000000e+00 : f32
    %23 = vector.broadcast %cst_6 : f32 to vector<4x256xf32>
    %24 = arith.subf %23, %22 : vector<4x256xf32>
    %25 = arith.mulf %22, %24 : vector<4x256xf32>
    %26 = math.log1p %25 : vector<4x256xf32>
    %cst_7 = arith.constant 0.000000e+00 : f32
    %27 = vector.broadcast %cst_7 : f32 to vector<4x256xf32>
    %28 = arith.subf %27, %26 : vector<4x256xf32>
    %cst_8 = arith.constant 5.000000e+00 : f32
    %29 = vector.broadcast %cst_8 : f32 to vector<4x256xf32>
    %30 = arith.cmpf olt, %28, %29 : vector<4x256xf32>
    %cst_9 = arith.constant 2.500000e+00 : f32
    %31 = vector.broadcast %cst_9 : f32 to vector<4x256xf32>
    %32 = arith.subf %28, %31 : vector<4x256xf32>
    %33 = math.sqrt %28 : vector<4x256xf32>
    %cst_10 = arith.constant 3.000000e+00 : f32
    %34 = vector.broadcast %cst_10 : f32 to vector<4x256xf32>
    %35 = arith.subf %33, %34 : vector<4x256xf32>
    %36 = arith.select %30, %32, %35 : vector<4x256xi1>, vector<4x256xf32>
    %cst_11 = arith.constant 2.81022636E-8 : f32
    %cst_12 = arith.constant -2.00214257E-4 : f32
    %37 = vector.broadcast %cst_11 : f32 to vector<4x256xf32>
    %38 = vector.broadcast %cst_12 : f32 to vector<4x256xf32>
    %39 = arith.select %30, %37, %38 : vector<4x256xi1>, vector<4x256xf32>
    %cst_13 = arith.constant 3.43273939E-7 : f32
    %cst_14 = arith.constant 1.00950558E-4 : f32
    %40 = vector.broadcast %cst_13 : f32 to vector<4x256xf32>
    %41 = vector.broadcast %cst_14 : f32 to vector<4x256xf32>
    %42 = arith.select %30, %40, %41 : vector<4x256xi1>, vector<4x256xf32>
    %43 = arith.mulf %39, %36 : vector<4x256xf32>
    %44 = arith.addf %42, %43 : vector<4x256xf32>
    %cst_15 = arith.constant -3.5233877E-6 : f32
    %cst_16 = arith.constant 0.00134934322 : f32
    %45 = vector.broadcast %cst_15 : f32 to vector<4x256xf32>
    %46 = vector.broadcast %cst_16 : f32 to vector<4x256xf32>
    %47 = arith.select %30, %45, %46 : vector<4x256xi1>, vector<4x256xf32>
    %48 = arith.mulf %44, %36 : vector<4x256xf32>
    %49 = arith.addf %47, %48 : vector<4x256xf32>
    %cst_17 = arith.constant -4.39150654E-6 : f32
    %cst_18 = arith.constant -0.00367342844 : f32
    %50 = vector.broadcast %cst_17 : f32 to vector<4x256xf32>
    %51 = vector.broadcast %cst_18 : f32 to vector<4x256xf32>
    %52 = arith.select %30, %50, %51 : vector<4x256xi1>, vector<4x256xf32>
    %53 = arith.mulf %49, %36 : vector<4x256xf32>
    %54 = arith.addf %52, %53 : vector<4x256xf32>
    %cst_19 = arith.constant 2.1858087E-4 : f32
    %cst_20 = arith.constant 0.00573950773 : f32
    %55 = vector.broadcast %cst_19 : f32 to vector<4x256xf32>
    %56 = vector.broadcast %cst_20 : f32 to vector<4x256xf32>
    %57 = arith.select %30, %55, %56 : vector<4x256xi1>, vector<4x256xf32>
    %58 = arith.mulf %54, %36 : vector<4x256xf32>
    %59 = arith.addf %57, %58 : vector<4x256xf32>
    %cst_21 = arith.constant -0.00125372503 : f32
    %cst_22 = arith.constant -0.0076224613 : f32
    %60 = vector.broadcast %cst_21 : f32 to vector<4x256xf32>
    %61 = vector.broadcast %cst_22 : f32 to vector<4x256xf32>
    %62 = arith.select %30, %60, %61 : vector<4x256xi1>, vector<4x256xf32>
    %63 = arith.mulf %59, %36 : vector<4x256xf32>
    %64 = arith.addf %62, %63 : vector<4x256xf32>
    %cst_23 = arith.constant -0.00417768164 : f32
    %cst_24 = arith.constant 0.00943887047 : f32
    %65 = vector.broadcast %cst_23 : f32 to vector<4x256xf32>
    %66 = vector.broadcast %cst_24 : f32 to vector<4x256xf32>
    %67 = arith.select %30, %65, %66 : vector<4x256xi1>, vector<4x256xf32>
    %68 = arith.mulf %64, %36 : vector<4x256xf32>
    %69 = arith.addf %67, %68 : vector<4x256xf32>
    %cst_25 = arith.constant 0.246640727 : f32
    %cst_26 = arith.constant 1.00167406 : f32
    %70 = vector.broadcast %cst_25 : f32 to vector<4x256xf32>
    %71 = vector.broadcast %cst_26 : f32 to vector<4x256xf32>
    %72 = arith.select %30, %70, %71 : vector<4x256xi1>, vector<4x256xf32>
    %73 = arith.mulf %69, %36 : vector<4x256xf32>
    %74 = arith.addf %72, %73 : vector<4x256xf32>
    %cst_27 = arith.constant 1.50140941 : f32
    %cst_28 = arith.constant 2.83297682 : f32
    %75 = vector.broadcast %cst_27 : f32 to vector<4x256xf32>
    %76 = vector.broadcast %cst_28 : f32 to vector<4x256xf32>
    %77 = arith.select %30, %75, %76 : vector<4x256xi1>, vector<4x256xf32>
    %78 = arith.mulf %74, %36 : vector<4x256xf32>
    %79 = arith.addf %77, %78 : vector<4x256xf32>
    %80 = math.absf %22 : vector<4x256xf32>
    %cst_29 = arith.constant 1.000000e+00 : f32
    %81 = vector.broadcast %cst_29 : f32 to vector<4x256xf32>
    %82 = arith.cmpf oeq, %80, %81 : vector<4x256xf32>
    %cst_30 = arith.constant 0x7F800000 : f32
    %83 = vector.broadcast %cst_30 : f32 to vector<4x256xf32>
    %84 = arith.mulf %83, %22 : vector<4x256xf32>
    %85 = arith.mulf %79, %22 : vector<4x256xf32>
    %86 = arith.select %82, %84, %85 : vector<4x256xi1>, vector<4x256xf32>
    %cst_31 = arith.constant 1.41421354 : f32
    %87 = vector.broadcast %cst_31 : f32 to vector<4x256xf32>
    %88 = arith.mulf %87, %86 : vector<4x256xf32>
    %89 = arith.index_cast %arg0 : i32 to index
    %90 = memref.load %arg3[%89] : memref<2xf32, #tpu.memory_space<smem>>
    %91 = arith.index_cast %arg0 : i32 to index
    %92 = memref.load %arg4[%91] : memref<2xf32, #tpu.memory_space<smem>>
    %c0_32 = arith.constant 0 : index
    %c0_33 = arith.constant 0 : index
    %93 = vector.load %arg6[%c0_32, %c0_33] : memref<4x4xf32, #tpu.memory_space<vmem>>, vector<4x4xf32>
    %c0_34 = arith.constant 0 : index
    %c0_35 = arith.constant 0 : index
    %c0_36 = arith.constant 0 : index
    %94 = vector.load %arg7[%c0_34, %c0_35, %c0_36] : memref<1x4x1xf32, #tpu.memory_space<vmem>>, vector<1x4x1xf32>
    %95 = vector.shape_cast %94 : vector<1x4x1xf32> to vector<4x1xf32>
    %c0_37 = arith.constant 0 : index
    %c0_38 = arith.constant 0 : index
    %c0_39 = arith.constant 0 : index
    %96 = vector.load %arg8[%c0_37, %c0_38, %c0_39] : memref<1x4x1xf32, #tpu.memory_space<vmem>>, vector<1x4x1xf32>
    %97 = vector.shape_cast %96 : vector<1x4x1xf32> to vector<4x1xf32>
    %98 = vector.broadcast %90 : f32 to vector<4x256xf32>
    %99 = arith.mulf %98, %5 : vector<4x256xf32>
    %100 = vector.broadcast %92 : f32 to vector<4x256xf32>
    %101 = arith.mulf %100, %88 : vector<4x256xf32>
    %102 = arith.addf %99, %101 : vector<4x256xf32>
    %cst_40 = arith.constant dense<0.000000e+00> : vector<4x256xf32>
    %103 = tpu.matmul %93, %102, %cst_40 {dimension_numbers = #tpu.dot_dimension_numbers<[1], [0], [0], [1], [0, 0, 1, 1], [], []>} : vector<4x4xf32>, vector<4x256xf32>, vector<4x256xf32> -> vector<4x256xf32>
    %104 = vector.broadcast %95 : vector<4x1xf32> to vector<4x256xf32>
    %105 = arith.addf %103, %104 : vector<4x256xf32>
    %cst_41 = arith.constant 1.000000e+00 : f32
    %106 = vector.broadcast %cst_41 : f32 to vector<4x1xf32>
    %107 = arith.addf %106, %97 : vector<4x1xf32>
    %108 = vector.broadcast %107 : vector<4x1xf32> to vector<4x256xf32>
    %109 = arith.mulf %105, %108 : vector<4x256xf32>
    %110 = arith.subf %88, %109 : vector<4x256xf32>
    %111 = arith.mulf %110, %110 : vector<4x256xf32>
    %c0_i32_42 = arith.constant 0 : i32
    %112 = arith.cmpi eq, %arg1, %c0_i32_42 : i32
    %113 = arith.extui %112 : i1 to i32
    %c0_i32_43 = arith.constant 0 : i32
    %114 = arith.cmpi ne, %113, %c0_i32_43 : i32
    scf.if %114 {
      %cst_52 = arith.constant 0.000000e+00 : f32
      %122 = vector.broadcast %cst_52 : f32 to vector<1x1x128xf32>
      %c0_53 = arith.constant 0 : index
      %c0_54 = arith.constant 0 : index
      %c0_55 = arith.constant 0 : index
      %123 = vector.load %arg9[%c0_53, %c0_54, %c0_55] : memref<1x1x128xf32, #tpu.memory_space<vmem>>, vector<1x1x128xf32>
      tpu.vector_store %arg9[%c0_53, %c0_54, %c0_55], %122 {strides = array<i32>} : memref<1x1x128xf32, #tpu.memory_space<vmem>>, vector<1x1x128xf32>,
    } else {
    }
    %115 = vector.shape_cast %111 : vector<4x256xf32> to vector<4x2x128xf32>
    %cst_44 = arith.constant dense<0.000000e+00> : vector<2x128xf32>
    %116 = vector.multi_reduction <add>, %115, %cst_44 [0] : vector<4x2x128xf32> to vector<2x128xf32>
    %cst_45 = arith.constant dense<0.000000e+00> : vector<128xf32>
    %117 = vector.multi_reduction <add>, %116, %cst_45 [0] : vector<2x128xf32> to vector<128xf32>
    %c0_46 = arith.constant 0 : index
    %c0_47 = arith.constant 0 : index
    %c0_48 = arith.constant 0 : index
    %118 = vector.load %arg9[%c0_46, %c0_47, %c0_48] : memref<1x1x128xf32, #tpu.memory_space<vmem>>, vector<1x1x128xf32>
    %119 = vector.shape_cast %117 : vector<128xf32> to vector<1x1x128xf32>
    %120 = arith.addf %118, %119 : vector<1x1x128xf32>
    %c0_49 = arith.constant 0 : index
    %c0_50 = arith.constant 0 : index
    %c0_51 = arith.constant 0 : index
    %121 = vector.load %arg9[%c0_49, %c0_50, %c0_51] : memref<1x1x128xf32, #tpu.memory_space<vmem>>, vector<1x1x128xf32>
    tpu.vector_store %arg9[%c0_49, %c0_50, %c0_51], %120 {strides = array<i32>} : memref<1x1x128xf32, #tpu.memory_space<vmem>>, vector<1x1x128xf32>,
    return
  }
  func.func @transform_0(%arg0: i32, %arg1: i32) -> i32 {
    %c0_i32 = arith.constant 0 : i32
    %c0_i32_0 = arith.constant 0 : i32
    return %c0_i32 : i32
  }
  func.func @transform_1(%arg0: i32, %arg1: i32) -> i32 {
    %c0_i32 = arith.constant 0 : i32
    %c0_i32_0 = arith.constant 0 : i32
    return %c0_i32 : i32
  }
  func.func @transform_2(%arg0: i32, %arg1: i32) -> i32 {
    %c0_i32 = arith.constant 0 : i32
    %c0_i32_0 = arith.constant 0 : i32
    return %c0_i32 : i32
  }
  func.func @transform_3(%arg0: i32, %arg1: i32) -> (i32, i32, i32) {
    %c0_i32 = arith.constant 0 : i32
    %c0_i32_0 = arith.constant 0 : i32
    return %arg0, %c0_i32, %arg1 : i32, i32, i32
  }
  func.func @transform_4(%arg0: i32, %arg1: i32) -> (i32, i32) {
    %c0_i32 = arith.constant 0 : i32
    %c0_i32_0 = arith.constant 0 : i32
    %c0_i32_1 = arith.constant 0 : i32
    return %c0_i32, %c0_i32_0 : i32, i32
  }
  func.func @transform_5(%arg0: i32, %arg1: i32) -> (i32, i32, i32) {
    %c0_i32 = arith.constant 0 : i32
    %c0_i32_0 = arith.constant 0 : i32
    %c0_i32_1 = arith.constant 0 : i32
    return %arg0, %c0_i32, %c0_i32_0 : i32, i32, i32
  }
  func.func @transform_6(%arg0: i32, %arg1: i32) -> (i32, i32, i32) {
    %c0_i32 = arith.constant 0 : i32
    %c0_i32_0 = arith.constant 0 : i32
    %c0_i32_1 = arith.constant 0 : i32
    return %arg0, %c0_i32, %c0_i32_0 : i32, i32, i32
  }
  func.func @transform_7(%arg0: i32, %arg1: i32) -> (i32, i32, i32) {
    %c0_i32 = arith.constant 0 : i32
    %c0_i32_0 = arith.constant 0 : i32
    %c0_i32_1 = arith.constant 0 : i32
    return %arg0, %c0_i32, %c0_i32_0 : i32, i32, i32
  }
}

module attributes {stable_mosaic.version = 11 : i64} {
  func.func @_ddpm_kernel_ext_noise(%arg0: i32, %arg1: i32, %arg2: memref<2xf32, #tpu.memory_space<smem>>, %arg3: memref<2xf32, #tpu.memory_space<smem>>, %arg4: memref<1x4x256xf32, #tpu.memory_space<vmem>>, %arg5: memref<1x4x256xf32, #tpu.memory_space<vmem>>, %arg6: memref<4x4xf32, #tpu.memory_space<vmem>>, %arg7: memref<1x4x1xf32, #tpu.memory_space<vmem>>, %arg8: memref<1x4x1xf32, #tpu.memory_space<vmem>>, %arg9: memref<1x1x128xf32, #tpu.memory_space<vmem>>) attributes {dimension_semantics = [#tpu.dimension_semantics<parallel>, #tpu.dimension_semantics<arbitrary>], iteration_bounds = array<i64: 2, 1>, scalar_prefetch = 0 : i64, scratch_operands = 0 : i64, tpu.core_type = #tpu.core_type<tc>, window_params = [{transform_indices = @transform_0, window_bounds = array<i64: 2>}, {transform_indices = @transform_1, window_bounds = array<i64: 2>}, {transform_indices = @transform_2, window_bounds = array<i64: 1, 4, 256>}, {transform_indices = @transform_3, window_bounds = array<i64: 1, 4, 256>}, {pipeline_mode = #tpu.pipeline_mode<synchronous>, transform_indices = @transform_4, window_bounds = array<i64: 4, 4>}, {transform_indices = @transform_5, window_bounds = array<i64: 1, 4, 1>}, {transform_indices = @transform_6, window_bounds = array<i64: 1, 4, 1>}, {transform_indices = @transform_7, window_bounds = array<i64: 1, 1, 128>}]} {
    %c0 = arith.constant 0 : index
    %c0_0 = arith.constant 0 : index
    %c0_1 = arith.constant 0 : index
    %0 = vector.load %arg4[%c0, %c0_0, %c0_1] : memref<1x4x256xf32, #tpu.memory_space<vmem>>, vector<1x4x256xf32>
    %1 = vector.shape_cast %0 : vector<1x4x256xf32> to vector<4x256xf32>
    %c0_2 = arith.constant 0 : index
    %c0_3 = arith.constant 0 : index
    %c0_4 = arith.constant 0 : index
    %2 = vector.load %arg5[%c0_2, %c0_3, %c0_4] : memref<1x4x256xf32, #tpu.memory_space<vmem>>, vector<1x4x256xf32>
    %3 = vector.shape_cast %2 : vector<1x4x256xf32> to vector<4x256xf32>
    %4 = arith.index_cast %arg0 : i32 to index
    %5 = memref.load %arg2[%4] : memref<2xf32, #tpu.memory_space<smem>>
    %6 = arith.index_cast %arg0 : i32 to index
    %7 = memref.load %arg3[%6] : memref<2xf32, #tpu.memory_space<smem>>
    %c0_5 = arith.constant 0 : index
    %c0_6 = arith.constant 0 : index
    %8 = vector.load %arg6[%c0_5, %c0_6] : memref<4x4xf32, #tpu.memory_space<vmem>>, vector<4x4xf32>
    %c0_7 = arith.constant 0 : index
    %c0_8 = arith.constant 0 : index
    %c0_9 = arith.constant 0 : index
    %9 = vector.load %arg7[%c0_7, %c0_8, %c0_9] : memref<1x4x1xf32, #tpu.memory_space<vmem>>, vector<1x4x1xf32>
    %10 = vector.shape_cast %9 : vector<1x4x1xf32> to vector<4x1xf32>
    %c0_10 = arith.constant 0 : index
    %c0_11 = arith.constant 0 : index
    %c0_12 = arith.constant 0 : index
    %11 = vector.load %arg8[%c0_10, %c0_11, %c0_12] : memref<1x4x1xf32, #tpu.memory_space<vmem>>, vector<1x4x1xf32>
    %12 = vector.shape_cast %11 : vector<1x4x1xf32> to vector<4x1xf32>
    %13 = vector.broadcast %5 : f32 to vector<4x256xf32>
    %14 = arith.mulf %13, %1 : vector<4x256xf32>
    %15 = vector.broadcast %7 : f32 to vector<4x256xf32>
    %16 = arith.mulf %15, %3 : vector<4x256xf32>
    %17 = arith.addf %14, %16 : vector<4x256xf32>
    %cst = arith.constant dense<0.000000e+00> : vector<4x256xf32>
    %18 = tpu.matmul %8, %17, %cst {dimension_numbers = #tpu.dot_dimension_numbers<[1], [0], [0], [1], [0, 0, 1, 1], [], []>} : vector<4x4xf32>, vector<4x256xf32>, vector<4x256xf32> -> vector<4x256xf32>
    %19 = vector.broadcast %10 : vector<4x1xf32> to vector<4x256xf32>
    %20 = arith.addf %18, %19 : vector<4x256xf32>
    %cst_13 = arith.constant 1.000000e+00 : f32
    %21 = vector.broadcast %cst_13 : f32 to vector<4x1xf32>
    %22 = arith.addf %21, %12 : vector<4x1xf32>
    %23 = vector.broadcast %22 : vector<4x1xf32> to vector<4x256xf32>
    %24 = arith.mulf %20, %23 : vector<4x256xf32>
    %25 = arith.subf %3, %24 : vector<4x256xf32>
    %26 = arith.mulf %25, %25 : vector<4x256xf32>
    %c0_i32 = arith.constant 0 : i32
    %27 = arith.cmpi eq, %arg1, %c0_i32 : i32
    %28 = arith.extui %27 : i1 to i32
    %c0_i32_14 = arith.constant 0 : i32
    %29 = arith.cmpi ne, %28, %c0_i32_14 : i32
    scf.if %29 {
      %cst_23 = arith.constant 0.000000e+00 : f32
      %37 = vector.broadcast %cst_23 : f32 to vector<1x1x128xf32>
      %c0_24 = arith.constant 0 : index
      %c0_25 = arith.constant 0 : index
      %c0_26 = arith.constant 0 : index
      %38 = vector.load %arg9[%c0_24, %c0_25, %c0_26] : memref<1x1x128xf32, #tpu.memory_space<vmem>>, vector<1x1x128xf32>
      tpu.vector_store %arg9[%c0_24, %c0_25, %c0_26], %37 {strides = array<i32>} : memref<1x1x128xf32, #tpu.memory_space<vmem>>, vector<1x1x128xf32>,
    } else {
    }
    %30 = vector.shape_cast %26 : vector<4x256xf32> to vector<4x2x128xf32>
    %cst_15 = arith.constant dense<0.000000e+00> : vector<2x128xf32>
    %31 = vector.multi_reduction <add>, %30, %cst_15 [0] : vector<4x2x128xf32> to vector<2x128xf32>
    %cst_16 = arith.constant dense<0.000000e+00> : vector<128xf32>
    %32 = vector.multi_reduction <add>, %31, %cst_16 [0] : vector<2x128xf32> to vector<128xf32>
    %c0_17 = arith.constant 0 : index
    %c0_18 = arith.constant 0 : index
    %c0_19 = arith.constant 0 : index
    %33 = vector.load %arg9[%c0_17, %c0_18, %c0_19] : memref<1x1x128xf32, #tpu.memory_space<vmem>>, vector<1x1x128xf32>
    %34 = vector.shape_cast %32 : vector<128xf32> to vector<1x1x128xf32>
    %35 = arith.addf %33, %34 : vector<1x1x128xf32>
    %c0_20 = arith.constant 0 : index
    %c0_21 = arith.constant 0 : index
    %c0_22 = arith.constant 0 : index
    %36 = vector.load %arg9[%c0_20, %c0_21, %c0_22] : memref<1x1x128xf32, #tpu.memory_space<vmem>>, vector<1x1x128xf32>
    tpu.vector_store %arg9[%c0_20, %c0_21, %c0_22], %35 {strides = array<i32>} : memref<1x1x128xf32, #tpu.memory_space<vmem>>, vector<1x1x128xf32>,
    return
  }
  func.func @transform_0(%arg0: i32, %arg1: i32) -> i32 {
    %c0_i32 = arith.constant 0 : i32
    %c0_i32_0 = arith.constant 0 : i32
    return %c0_i32 : i32
  }
  func.func @transform_1(%arg0: i32, %arg1: i32) -> i32 {
    %c0_i32 = arith.constant 0 : i32
    %c0_i32_0 = arith.constant 0 : i32
    return %c0_i32 : i32
  }
  func.func @transform_2(%arg0: i32, %arg1: i32) -> (i32, i32, i32) {
    %c0_i32 = arith.constant 0 : i32
    %c0_i32_0 = arith.constant 0 : i32
    return %arg0, %c0_i32, %arg1 : i32, i32, i32
  }
  func.func @transform_3(%arg0: i32, %arg1: i32) -> (i32, i32, i32) {
    %c0_i32 = arith.constant 0 : i32
    %c0_i32_0 = arith.constant 0 : i32
    return %arg0, %c0_i32, %arg1 : i32, i32, i32
  }
  func.func @transform_4(%arg0: i32, %arg1: i32) -> (i32, i32) {
    %c0_i32 = arith.constant 0 : i32
    %c0_i32_0 = arith.constant 0 : i32
    %c0_i32_1 = arith.constant 0 : i32
    return %c0_i32, %c0_i32_0 : i32, i32
  }
  func.func @transform_5(%arg0: i32, %arg1: i32) -> (i32, i32, i32) {
    %c0_i32 = arith.constant 0 : i32
    %c0_i32_0 = arith.constant 0 : i32
    %c0_i32_1 = arith.constant 0 : i32
    return %arg0, %c0_i32, %c0_i32_0 : i32, i32, i32
  }
  func.func @transform_6(%arg0: i32, %arg1: i32) -> (i32, i32, i32) {
    %c0_i32 = arith.constant 0 : i32
    %c0_i32_0 = arith.constant 0 : i32
    %c0_i32_1 = arith.constant 0 : i32
    return %arg0, %c0_i32, %c0_i32_0 : i32, i32, i32
  }
  func.func @transform_7(%arg0: i32, %arg1: i32) -> (i32, i32, i32) {
    %c0_i32 = arith.constant 0 : i32
    %c0_i32_0 = arith.constant 0 : i32
    %c0_i32_1 = arith.constant 0 : i32
    return %arg0, %c0_i32, %c0_i32_0 : i32, i32, i32
  }
}

</mosaic_0001>

<llo_original>
// kernel: tpu_custom_call.1
$region0: #{tpu_custom_call.1}
  #allocation0 [shape = 'u32[]', space=smem, size = 0x4, offset = 0x4, fixed_abs, tag = 'smem constant byte address 0x4 - core index']
  #allocation1 [shape = 'u32[72,128]{1,0:T(1,128)}', space=vmem, size = 0x9000, scoped, tag = 'internal scratch']
  #allocation2 [shape = 's32[1]{0:T(128)S(6)}', space=smem, size = 0x200, scoped, tag = 'scoped memory for tpu_custom_call.1']
  %s0 = inlined_call_operand.<no memory space> [shape: s32[1], index: 0, kind: input, shape index: {}]
  %s1 = inlined_call_operand.hbm [shape: f32[2], index: 1, kind: input, shape index: {}]
  %s2 = inlined_call_operand.hbm [shape: f32[2], index: 2, kind: input, shape index: {}]
  %s3 = inlined_call_operand.vmem [shape: f32[2,4,256], index: 3, kind: input, shape index: {}]
  %s4 = inlined_call_operand.vmem [shape: f32[4,4], index: 4, kind: input, shape index: {}]
  %s5 = inlined_call_operand.vmem [shape: f32[2,4,1], index: 5, kind: input, shape index: {}]
  %s6 = inlined_call_operand.vmem [shape: f32[2,4,1], index: 6, kind: input, shape index: {}]
  %s7 = inlined_call_operand.hbm [shape: f32[2,1,128], index: 7, kind: output, shape index: {}]
  %s8 = sld [smem:[#allocation0]]
  $region73: #{tpu_custom_call.1} parent=0
    _
  %s10 = ssub.s32 1, %s8
  %s11 = scalar_select 0, %s10, %s8
  %12 = sst [smem:[#allocation2]] %s0
  $region1: #{tpu_custom_call.1} parent=0
    #allocation3 [shape = 'u8[512]{0}', space=smem, size = 0x200, scoped, tag = 'input window, operand 1, single buffered']
    #allocation4 [shape = 's32[2]{0}', space=sflag, size = 0x8, scoped, tag = 'scoped memory for tpu_custom_call.1']
    #allocation5 [shape = 's32[2]{0}', space=sflag, size = 0x8, scoped, tag = 'scoped memory for tpu_custom_call.1']
    #allocation6 [shape = 'u8[512]{0}', space=smem, size = 0x200, scoped, tag = 'input window, operand 2, single buffered']
    #allocation7 [shape = 's32[1]{0}', space=sflag, size = 0x4, scoped, tag = 'scoped memory for tpu_custom_call.1']
    #allocation8 [shape = 'u8[1024]{0}', space=vmem, size = 0x400, scoped, tag = 'output window, operand 0']
    %13 = vsyncpa [#allocation5], 0
    %14 = vsyncpa [#allocation7], 0
    %15 = vsyncpa [#allocation4], 0
    %s16 = scalar_lea.sflag [#allocation4], 1
    %17 = vsyncpa %s16, 0
    loop: start=0, step=1, limit=4
    $region2: #{tpu_custom_call.1} parent=1 // loop_pre_header
      _
    $region3: #{tpu_custom_call.1} parent=1 // loop_header
      %s19 = sphi 0, %s23
      %p20 = scmp.ge.s32.totalorder %s19, 4
      %s26 = sphi 0, %s38
      %s27 = sphi 0, %s34
      %s28 = sphi 0, %s26
      %s29 = sphi 0, %s27
      %s30 = sphi 0, %s28
      %s31 = sphi 0, %s29
      %s39 = sphi 0, %s39
      %s41 = sphi 0, %s39
      %s42 = sphi 0, %s41
      %s56 = sphi 0, %s42
      %s60 = sphi 0, %s60
      %s62 = sphi 0, %s60
      %s63 = sphi 0, %s62
      %s77 = sphi 0, %s63
      %s81 = sphi 0, %s81
      %s83 = sphi 0, %s81
      %s84 = sphi 0, %s83
      %s98 = sphi 0, %s84
      %s106 = sphi 0, %s108
      %s109 = sphi 0, %s106
      %s110 = sphi 0, %s109
      %s126 = sphi 0, %s110
      %s130 = sphi 0, %s130
      %s132 = sphi 0, %s130
      %s133 = sphi 0, %s132
      %s147 = sphi 0, %s133
      %s153 = sphi 0, %s155
      %s156 = sphi 0, %s153
      %s157 = sphi 0, %s156
      %s173 = sphi 0, %s157
      %s179 = sphi 0, %s181
      %s182 = sphi 0, %s179
      %s183 = sphi 0, %s182
      %s199 = sphi 0, %s183
      %s205 = sphi 0, %s207
      %s208 = sphi 0, %s205
      %s209 = sphi 0, %s208
      %s225 = sphi 0, %s209
    $region4: #{tpu_custom_call.1} parent=1 // loop_header_branch
      %22 = sbr.rel (%p20) target = $region8
    $region5: #{tpu_custom_call.1} parent=1 // loop_body
      %s24 = ssub.s32 %s19, 1
      %s25 = ssub.s32 %s19, 2
      %s32 = sadd.s32 1, %s27
      %p33 = scmp.ge.s32.totalorder %s32, 1
      %s34 = scalar_select %p33, 0, %s32
      %s35 = sadd.s32 1, %s26
      %s36 = scalar_select %p33, %s35, %s26
      %p37 = scmp.ge.s32.totalorder %s36, 2
      %s38 = scalar_select %p37, 0, %s36
      %s40 = sadd.s32 %s39, 1
      %p43 = scmp.eq.s32.totalorder %s19, 1
      %p44 = scmp.ne.s32.totalorder %s39, %s41
      %p45 = scmp.eq.s32.totalorder %s19, 0
      %p46 = por %p44, %p45
      %p47 = scmp.ne.s32.totalorder %s39, %s41
      %p48 = scmp.eq.s32.totalorder %s24, 1
      %p49 = por %p47, %p48
      %p50 = scmp.ne.s32.totalorder %s41, %s42
      %p51 = scmp.eq.s32.totalorder %s24, 0
      %p52 = por %p50, %p51
      %p53 = scmp.ne.s32.totalorder %s41, %s42
      %p54 = scmp.eq.s32.totalorder %s25, 1
      %p55 = por %p53, %p54
      %p57 = scmp.ne.s32.totalorder %s42, %s56
      %p58 = scmp.eq.s32.totalorder %s25, 0
      %p59 = por %p57, %p58
      %s61 = sadd.s32 %s60, 1
      %p64 = scmp.eq.s32.totalorder %s19, 1
      %p65 = scmp.ne.s32.totalorder %s60, %s62
      %p66 = scmp.eq.s32.totalorder %s19, 0
      %p67 = por %p65, %p66
      %p68 = scmp.ne.s32.totalorder %s60, %s62
      %p69 = scmp.eq.s32.totalorder %s24, 1
      %p70 = por %p68, %p69
      %p71 = scmp.ne.s32.totalorder %s62, %s63
      %p72 = scmp.eq.s32.totalorder %s24, 0
      %p73 = por %p71, %p72
      %p74 = scmp.ne.s32.totalorder %s62, %s63
      %p75 = scmp.eq.s32.totalorder %s25, 1
      %p76 = por %p74, %p75
      %p78 = scmp.ne.s32.totalorder %s63, %s77
      %p79 = scmp.eq.s32.totalorder %s25, 0
      %p80 = por %p78, %p79
      %s82 = sadd.s32 %s81, 1
      %p85 = scmp.eq.s32.totalorder %s19, 1
      %p86 = scmp.ne.s32.totalorder %s81, %s83
      %p87 = scmp.eq.s32.totalorder %s19, 0
      %p88 = por %p86, %p87
      %p89 = scmp.ne.s32.totalorder %s81, %s83
      %p90 = scmp.eq.s32.totalorder %s24, 1
      %p91 = por %p89, %p90
      %p92 = scmp.ne.s32.totalorder %s83, %s84
      %p93 = scmp.eq.s32.totalorder %s24, 0
      %p94 = por %p92, %p93
      %p95 = scmp.ne.s32.totalorder %s83, %s84
      %p96 = scmp.eq.s32.totalorder %s25, 1
      %p97 = por %p95, %p96
      %p99 = scmp.ne.s32.totalorder %s84, %s98
      %p100 = scmp.eq.s32.totalorder %s25, 0
      %p101 = por %p99, %p100
      %s102 = ssub.s32 %s26, %s38
      %s103 = ssub.s32 %s27, %s34
      %s104 = sor.u32 %s102, %s103
      %p105 = scmp.eq.s32.totalorder %s104, 0
      %s107 = sadd.s32 %s106, 1
      %s108 = scalar_select %p105, %s106, %s107
      %p111 = pneg %p105
      %p112 = scmp.eq.s32.totalorder %s19, 1
      %p113 = por %p111, %p112
      %p114 = scmp.ne.s32.totalorder %s106, %s109
      %p115 = scmp.eq.s32.totalorder %s19, 0
      %p116 = por %p114, %p115
      %p117 = scmp.ne.s32.totalorder %s106, %s109
      %p118 = scmp.eq.s32.totalorder %s24, 1
      %p119 = por %p117, %p118
      %p120 = scmp.ne.s32.totalorder %s109, %s110
      %p121 = scmp.eq.s32.totalorder %s24, 0
      %p122 = por %p120, %p121
      %p123 = scmp.ne.s32.totalorder %s109, %s110
      %p124 = scmp.eq.s32.totalorder %s25, 1
      %p125 = por %p123, %p124
      %p127 = scmp.ne.s32.totalorder %s110, %s126
      %p128 = scmp.eq.s32.totalorder %s25, 0
      %p129 = por %p127, %p128
      %s131 = sadd.s32 %s130, 1
      %p134 = scmp.eq.s32.totalorder %s19, 1
      %p135 = scmp.ne.s32.totalorder %s130, %s132
      %p136 = scmp.eq.s32.totalorder %s19, 0
      %p137 = por %p135, %p136
      %p138 = scmp.ne.s32.totalorder %s130, %s132
      %p139 = scmp.eq.s32.totalorder %s24, 1
      %p140 = por %p138, %p139
      %p141 = scmp.ne.s32.totalorder %s132, %s133
      %p142 = scmp.eq.s32.totalorder %s24, 0
      %p143 = por %p141, %p142
      %p144 = scmp.ne.s32.totalorder %s132, %s133
      %p145 = scmp.eq.s32.totalorder %s25, 1
      %p146 = por %p144, %p145
      %p148 = scmp.ne.s32.totalorder %s133, %s147
      %p149 = scmp.eq.s32.totalorder %s25, 0
      %p150 = por %p148, %p149
      %s151 = ssub.s32 %s26, %s38
      %p152 = scmp.eq.s32.totalorder %s151, 0
      %s154 = sadd.s32 %s153, 1
      %s155 = scalar_select %p152, %s153, %s154
      %p158 = pneg %p152
      %p159 = scmp.eq.s32.totalorder %s19, 1
      %p160 = por %p158, %p159
      %p161 = scmp.ne.s32.totalorder %s153, %s156
      %p162 = scmp.eq.s32.totalorder %s19, 0
      %p163 = por %p161, %p162
      %p164 = scmp.ne.s32.totalorder %s153, %s156
      %p165 = scmp.eq.s32.totalorder %s24, 1
      %p166 = por %p164, %p165
      %p167 = scmp.ne.s32.totalorder %s156, %s157
      %p168 = scmp.eq.s32.totalorder %s24, 0
      %p169 = por %p167, %p168
      %p170 = scmp.ne.s32.totalorder %s156, %s157
      %p171 = scmp.eq.s32.totalorder %s25, 1
      %p172 = por %p170, %p171
      %p174 = scmp.ne.s32.totalorder %s157, %s173
      %p175 = scmp.eq.s32.totalorder %s25, 0
      %p176 = por %p174, %p175
      %s177 = ssub.s32 %s26, %s38
      %p178 = scmp.eq.s32.totalorder %s177, 0
      %s180 = sadd.s32 %s179, 1
      %s181 = scalar_select %p178, %s179, %s180
      %p184 = pneg %p178
      %p185 = scmp.eq.s32.totalorder %s19, 1
      %p186 = por %p184, %p185
      %p187 = scmp.ne.s32.totalorder %s179, %s182
      %p188 = scmp.eq.s32.totalorder %s19, 0
      %p189 = por %p187, %p188
      %p190 = scmp.ne.s32.totalorder %s179, %s182
      %p191 = scmp.eq.s32.totalorder %s24, 1
      %p192 = por %p190, %p191
      %p193 = scmp.ne.s32.totalorder %s182, %s183
      %p194 = scmp.eq.s32.totalorder %s24, 0
      %p195 = por %p193, %p194
      %p196 = scmp.ne.s32.totalorder %s182, %s183
      %p197 = scmp.eq.s32.totalorder %s25, 1
      %p198 = por %p196, %p197
      %p200 = scmp.ne.s32.totalorder %s183, %s199
      %p201 = scmp.eq.s32.totalorder %s25, 0
      %p202 = por %p200, %p201
      %s203 = ssub.s32 %s26, %s38
      %p204 = scmp.eq.s32.totalorder %s203, 0
      %s206 = sadd.s32 %s205, 1
      %s207 = scalar_select %p204, %s205, %s206
      %p210 = pneg %p204
      %p211 = scmp.eq.s32.totalorder %s19, 1
      %p212 = por %p210, %p211
      %p213 = scmp.ne.s32.totalorder %s205, %s208
      %p214 = scmp.eq.s32.totalorder %s19, 0
      %p215 = por %p213, %p214
      %p216 = scmp.ne.s32.totalorder %s205, %s208
      %p217 = scmp.eq.s32.totalorder %s24, 1
      %p218 = por %p216, %p217
      %p219 = scmp.ne.s32.totalorder %s208, %s209
      %p220 = scmp.eq.s32.totalorder %s24, 0
      %p221 = por %p219, %p220
      %p222 = scmp.ne.s32.totalorder %s208, %s209
      %p223 = scmp.eq.s32.totalorder %s25, 1
      %p224 = por %p222, %p223
      %p226 = scmp.ne.s32.totalorder %s209, %s225
      %p227 = scmp.eq.s32.totalorder %s25, 0
      %p228 = por %p226, %p227
      %p229 = scmp.le.s32.totalorder 1, %s19
      %p230 = scmp.lt.s32.totalorder %s19, 3
      %p231 = pnand %p229, %p230
      %p232 = pneg %p231
      // Predicated region
      $region9: #{tpu_custom_call.1} parent=5 // pred_check
        _
      $region10: #{tpu_custom_call.1} parent=5 // pred_check_branch
        %234 = sbr.rel (%p231) target = $region12
      $region11: #{tpu_custom_call.1} parent=5 // pred_region
        %s235 = ssub.s32 %s19, 1
        // Predicated region
        $region13: #{tpu_custom_call.1} parent=11 // pred_check
          %p236 = pneg %p52
        $region14: #{tpu_custom_call.1} parent=11 // pred_check_branch
          %238 = sbr.rel (%p236) target = $region16
        $region15: #{tpu_custom_call.1} parent=11 // pred_region
          _
        $region16: #{tpu_custom_call.1} parent=11 // pred_fallthru
          _
        // Predicated region
        $region17: #{tpu_custom_call.1} parent=11 // pred_check
          %p239 = pneg %p73
        $region18: #{tpu_custom_call.1} parent=11 // pred_check_branch
          %241 = sbr.rel (%p239) target = $region20
        $region19: #{tpu_custom_call.1} parent=11 // pred_region
          %243 = vsyncadd [#allocation5], 0
          %s245 = sshll.u32 %s1, 4
          %s246 = int_to_ptr.hbm [resolvable:$true] %s245
          %248 = dma.hbm_to_smem %s246, 16, [#allocation3], [#allocation5]
        $region20: #{tpu_custom_call.1} parent=11 // pred_fallthru
          _
        // Predicated region
        $region21: #{tpu_custom_call.1} parent=11 // pred_check
          %p249 = pneg %p94
        $region22: #{tpu_custom_call.1} parent=11 // pred_check_branch
          %251 = sbr.rel (%p249) target = $region24
        $region23: #{tpu_custom_call.1} parent=11 // pred_region
          %253 = vsyncadd [#allocation7], 0
          %s255 = sshll.u32 %s2, 4
          %s256 = int_to_ptr.hbm [resolvable:$true] %s255
          %258 = dma.hbm_to_smem %s256, 16, [#allocation6], [#allocation7]
        $region24: #{tpu_custom_call.1} parent=11 // pred_fallthru
          _
        // Predicated region
        $region25: #{tpu_custom_call.1} parent=11 // pred_check
          %p259 = pneg %p143
        $region26: #{tpu_custom_call.1} parent=11 // pred_check_branch
          %261 = sbr.rel (%p259) target = $region28
        $region27: #{tpu_custom_call.1} parent=11 // pred_region
          _
        $region28: #{tpu_custom_call.1} parent=11 // pred_fallthru
          _
      $region12: #{tpu_custom_call.1} parent=5 // pred_fallthru
        _
      %p262 = scmp.lt.s32.totalorder %s19, 2
      // Predicated region
      $region29: #{tpu_custom_call.1} parent=5 // pred_check
        %p263 = pneg %p262
      $region30: #{tpu_custom_call.1} parent=5 // pred_check_branch
        %265 = sbr.rel (%p263) target = $region32
      $region31: #{tpu_custom_call.1} parent=5 // pred_region
        // Predicated region
        $region33: #{tpu_custom_call.1} parent=31 // pred_check
          %p266 = pneg %p116
        $region34: #{tpu_custom_call.1} parent=31 // pred_check_branch
          %268 = sbr.rel (%p266) target = $region36
        $region35: #{tpu_custom_call.1} parent=31 // pred_region
          %s269 = smul.u32 2, %s27
          %p270 = scmp.lt.s32.totalorder %s26, 1
          %s271 = scalar_select %p270, %s26, 1
          %p272 = scmp.lt.s32.totalorder %s269, 1
          %s273 = scalar_select %p272, %s269, 1
          %s274 = smul.addr %s271, 2
          %s275 = sadd.s32 %s273, %s274
          %s276 = smul.addr %s275, 4
          %s277 = scalar_lea.vmem %s3, %s276
          %s278 = smul.u32 2, %s27
        $region36: #{tpu_custom_call.1} parent=31 // pred_fallthru
          _
        // Predicated region
        $region37: #{tpu_custom_call.1} parent=31 // pred_check
          %p279 = pneg %p163
        $region38: #{tpu_custom_call.1} parent=31 // pred_check_branch
          %281 = sbr.rel (%p279) target = $region40
        $region39: #{tpu_custom_call.1} parent=31 // pred_region
          %p282 = scmp.lt.s32.totalorder %s26, 1
          %s283 = scalar_select %p282, %s26, 1
          %s284 = smul.addr %s283, 4
          %s285 = scalar_lea.vmem %s5, %s284
        $region40: #{tpu_custom_call.1} parent=31 // pred_fallthru
          _
        // Predicated region
        $region41: #{tpu_custom_call.1} parent=31 // pred_check
          %p286 = pneg %p189
        $region42: #{tpu_custom_call.1} parent=31 // pred_check_branch
          %288 = sbr.rel (%p286) target = $region44
        $region43: #{tpu_custom_call.1} parent=31 // pred_region
          %p289 = scmp.lt.s32.totalorder %s26, 1
          %s290 = scalar_select %p289, %s26, 1
          %s291 = smul.addr %s290, 4
          %s292 = scalar_lea.vmem %s6, %s291
        $region44: #{tpu_custom_call.1} parent=31 // pred_fallthru
          _
      $region32: #{tpu_custom_call.1} parent=5 // pred_fallthru
        _
      %p293 = scmp.le.s32.totalorder 1, %s19
      %p294 = scmp.lt.s32.totalorder %s19, 3
      %p295 = pnand %p293, %p294
      %p296 = pneg %p295
      // Predicated region
      $region45: #{tpu_custom_call.1} parent=5 // pred_check
        _
      $region46: #{tpu_custom_call.1} parent=5 // pred_check_branch
        %298 = sbr.rel (%p295) target = $region48
      $region47: #{tpu_custom_call.1} parent=5 // pred_region
        %s299 = ssub.s32 %s19, 1
        // Predicated region
        $region49: #{tpu_custom_call.1} parent=47 // pred_check
          %p300 = pneg %p73
        $region50: #{tpu_custom_call.1} parent=47 // pred_check_branch
          %302 = sbr.rel (%p300) target = $region52
        $region51: #{tpu_custom_call.1} parent=47 // pred_region
          %304 = dma.done [#allocation5], 16
        $region52: #{tpu_custom_call.1} parent=47 // pred_fallthru
          _
        // Predicated region
        $region53: #{tpu_custom_call.1} parent=47 // pred_check
          %p305 = pneg %p94
        $region54: #{tpu_custom_call.1} parent=47 // pred_check_branch
          %307 = sbr.rel (%p305) target = $region56
        $region55: #{tpu_custom_call.1} parent=47 // pred_region
          %309 = dma.done [#allocation7], 16
        $region56: #{tpu_custom_call.1} parent=47 // pred_fallthru
          _
        %310 = sfence
        %p311 = pneg %p52
        %p312 = pneg %p49
        %p313 = pneg %p73
        %p314 = pneg %p70
        %p315 = pneg %p94
        %p316 = pneg %p91
        %s317 = smul.u32 2, %s29
        %p318 = scmp.lt.s32.totalorder %s28, 1
        %s319 = scalar_select %p318, %s28, 1
        %p320 = scmp.lt.s32.totalorder %s317, 1
        %s321 = scalar_select %p320, %s317, 1
        %s322 = smul.addr %s319, 2
        %s323 = sadd.s32 %s321, %s322
        %s324 = smul.addr %s323, 4
        %s325 = scalar_lea.vmem %s3, %s324
        %p326 = pneg %p122
        %p327 = pneg %p119
        %p328 = pneg %p143
        %p329 = pneg %p140
        %p330 = scmp.lt.s32.totalorder %s28, 1
        %s331 = scalar_select %p330, %s28, 1
        %s332 = smul.addr %s331, 4
        %s333 = scalar_lea.vmem %s5, %s332
        %p334 = pneg %p169
        %p335 = pneg %p166
        %p336 = scmp.lt.s32.totalorder %s28, 1
        %s337 = scalar_select %p336, %s28, 1
        %s338 = smul.addr %s337, 4
        %s339 = scalar_lea.vmem %s6, %s338
        %p340 = pneg %p195
        %p341 = pneg %p192
        %p342 = pneg %p221
        %p343 = pneg %p218
        %s344 = sand.u32 %s208, 1
        %s345 = scalar_lea.sflag [#allocation4], %s344
        %s346 = sand.u32 %s208, 1
        %s347 = scalar_lea.vmem [#allocation8], %s346
        %s348 = smul.u32 2, %s29
        %p349 = scmp.lt.s32.totalorder %s28, 1
        %s350 = scalar_select %p349, %s28, 1
        %p351 = scmp.lt.s32.totalorder %s348, 1
        %s352 = scalar_select %p351, %s348, 1
        %s353 = smul.addr %s350, 2
        %s354 = sadd.s32 %s352, %s353
        %s355 = smul.addr %s354, 4
        %s356 = scalar_lea.vmem %s3, %s355
        %s357 = smul.u32 2, %s29
        %p358 = scmp.lt.s32.totalorder %s28, 1
        %s359 = scalar_select %p358, %s28, 1
        %s360 = smul.addr %s359, 4
        %s361 = scalar_lea.vmem %s5, %s360
        %p362 = scmp.lt.s32.totalorder %s28, 1
        %s363 = scalar_select %p362, %s28, 1
        %s364 = smul.addr %s363, 4
        %s365 = scalar_lea.vmem %s6, %s364
        %s366 = sld [smem:[#allocation2]]
        %s367 = sadd.s32 %s366, %s28
        %s368 = sadd.s32 %s367, %s29
        %v369 = vlaneseq
        %v370 = vstv %s368
        %v371 = vxor.u32 %v370, %v370
        %v372 = vxor.u32 %v371, 466688986
        %v373 = vadd.s32 %v369, %v370
        %v374 = vadd.s32 %v373, %v373
        %v375 = vshll.u32 %v373, 13
        %v376 = vshrl.u32 %v373, 19
        %v377 = vor.u32 %v375, %v376
        %v378 = vxor.u32 %v374, %v377
        %v379 = vadd.s32 %v374, %v378
        %v380 = vshll.u32 %v378, 15
        %v381 = vshrl.u32 %v378, 17
        %v382 = vor.u32 %v380, %v381
        %v383 = vxor.u32 %v379, %v382
        %v384 = vadd.s32 %v379, %v383
        %v385 = vshll.u32 %v383, 26
        %v386 = vshrl.u32 %v383, 6
        %v387 = vor.u32 %v385, %v386
        %v388 = vxor.u32 %v384, %v387
        %v389 = vadd.s32 %v384, %v388
        %v390 = vshll.u32 %v388, 6
        %v391 = vshrl.u32 %v388, 26
        %v392 = vor.u32 %v390, %v391
        %v393 = vxor.u32 %v389, %v392
        %v394 = vadd.s32 %v389, %v370
        %v395 = vadd.s32 %v393, %v372
        %v396 = vadd.s32 %v395, 1
        %v397 = vadd.s32 %v394, %v396
        %v398 = vshll.u32 %v396, 17
        %v399 = vshrl.u32 %v396, 15
        %v400 = vor.u32 %v398, %v399
        %v401 = vxor.u32 %v397, %v400
        %v402 = vadd.s32 %v397, %v401
        %v403 = vshll.u32 %v401, 29
        %v404 = vshrl.u32 %v401, 3
        %v405 = vor.u32 %v403, %v404
        %v406 = vxor.u32 %v402, %v405
        %v407 = vadd.s32 %v402, %v406
        %v408 = vshll.u32 %v406, 16
        %v409 = vshrl.u32 %v406, 16
        %v410 = vor.u32 %v408, %v409
        %v411 = vxor.u32 %v407, %v410
        %v412 = vadd.s32 %v407, %v411
        %v413 = vshll.u32 %v411, 24
        %v414 = vshrl.u32 %v411, 8
        %v415 = vor.u32 %v413, %v414
        %v416 = vxor.u32 %v412, %v415
        %v417 = vadd.s32 %v412, %v372
        %v418 = vadd.s32 %v416, %v370
        %v419 = vadd.s32 %v418, 2
        %v420 = vadd.s32 %v417, %v419
        %v421 = vshll.u32 %v419, 13
        %v422 = vshrl.u32 %v419, 19
        %v423 = vor.u32 %v421, %v422
        %v424 = vxor.u32 %v420, %v423
        %v425 = vadd.s32 %v420, %v424
        %v426 = vshll.u32 %v424, 15
        %v427 = vshrl.u32 %v424, 17
        %v428 = vor.u32 %v426, %v427
        %v429 = vxor.u32 %v425, %v428
        %v430 = vadd.s32 %v425, %v429
        %v431 = vshll.u32 %v429, 26
        %v432 = vshrl.u32 %v429, 6
        %v433 = vor.u32 %v431, %v432
        %v434 = vxor.u32 %v430, %v433
        %v435 = vadd.s32 %v430, %v434
        %v436 = vshll.u32 %v434, 6
        %v437 = vshrl.u32 %v434, 26
        %v438 = vor.u32 %v436, %v437
        %v439 = vxor.u32 %v435, %v438
        %v440 = vadd.s32 %v435, %v370
        %v441 = vadd.s32 %v439, %v370
        %v442 = vadd.s32 %v441, 3
        %v443 = vadd.s32 %v440, %v442
        %v444 = vshll.u32 %v442, 17
        %v445 = vshrl.u32 %v442, 15
        %v446 = vor.u32 %v444, %v445
        %v447 = vxor.u32 %v443, %v446
        %v448 = vadd.s32 %v443, %v447
        %v449 = vshll.u32 %v447, 29
        %v450 = vshrl.u32 %v447, 3
        %v451 = vor.u32 %v449, %v450
        %v452 = vxor.u32 %v448, %v451
        %v453 = vadd.s32 %v448, %v452
        %v454 = vshll.u32 %v452, 16
        %v455 = vshrl.u32 %v452, 16
        %v456 = vor.u32 %v454, %v455
        %v457 = vxor.u32 %v453, %v456
        %v458 = vadd.s32 %v453, %v457
        %v459 = vshll.u32 %v457, 24
        %v460 = vshrl.u32 %v457, 8
        %v461 = vor.u32 %v459, %v460
        %v462 = vxor.u32 %v458, %v461
        %v463 = vadd.s32 %v458, %v370
        %v464 = vadd.s32 %v462, %v372
        %v465 = vadd.s32 %v464, 4
        %v466 = vadd.s32 %v463, %v465
        %v467 = vshll.u32 %v465, 13
        %v468 = vshrl.u32 %v465, 19
        %v469 = vor.u32 %v467, %v468
        %v470 = vxor.u32 %v466, %v469
        %v471 = vadd.s32 %v466, %v470
        %v472 = vshll.u32 %v470, 15
        %v473 = vshrl.u32 %v470, 17
        %v474 = vor.u32 %v472, %v473
        %v475 = vxor.u32 %v471, %v474
        %v476 = vadd.s32 %v471, %v475
        %v477 = vshll.u32 %v475, 26
        %v478 = vshrl.u32 %v475, 6
        %v479 = vor.u32 %v477, %v478
        %v480 = vxor.u32 %v476, %v479
        %v481 = vadd.s32 %v476, %v480
        %v482 = vshll.u32 %v480, 6
        %v483 = vshrl.u32 %v480, 26
        %v484 = vor.u32 %v482, %v483
        %v485 = vxor.u32 %v481, %v484
        %v486 = vadd.s32 %v481, %v372
        %v487 = vadd.s32 %v485, %v370
        %v488 = vadd.s32 %v487, 5
        %v489 = vxor.u32 %v486, %v488
        %490 = set.rngseed %v489
        %v491 = vld [vmem:[%s356] sm:$0xff]
        %v492 = vrng
        %v493 = vrng
        %v494 = vshrl.u32 %v492, 9
        %v495 = vshrl.u32 %v493, 9
        %v496 = vor.u32 %v494, 1065353216
        %v497 = vor.u32 %v495, 1065353216
        %v500 = vsub.f32 %v496, 1.0
        %v501 = vsub.f32 %v497, 1.0
        %v502 = vmul.f32 %v500, 2.0
        %v503 = vmul.f32 %v501, 2.0
        %v504 = vadd.f32 %v502, -0.99999994
        %v505 = vadd.f32 %v503, -0.99999994
        %v506 = vmax.f32 %v504, -0.99999994
        %v507 = vmax.f32 %v505, -0.99999994
        %v508 = vsub.f32 0.0, %v506
        %v509 = vsub.f32 0.0, %v507
        %v510 = vmul.f32 %v506, %v508
        %v511 = vmul.f32 %v507, %v509
        %v512 = vadd.f32 %v510, 1.0
        %v513 = vlog2.pop %v512
        %v514 = vmul.f32 %v513, 0.6931472
        %v515 = vmul.f32 -0.5, %v510
        %v516 = vadd.f32 %v515, 1.0
        %v517 = vmul.f32 %v516, %v510
        %v518 = vand.u32 2147483647, %v510
        %vm519 = vcmp.lt.f32.partialorder %v518, 0.0004427343
        %v520 = vsel %vm519, %v517, %v514
        %v521 = vadd.f32 %v511, 1.0
        %v522 = vlog2.pop %v521
        %v523 = vmul.f32 %v522, 0.6931472
        %v524 = vmul.f32 -0.5, %v511
        %v525 = vadd.f32 %v524, 1.0
        %v526 = vmul.f32 %v525, %v511
        %v527 = vand.u32 2147483647, %v511
        %vm528 = vcmp.lt.f32.partialorder %v527, 0.0004427343
        %v529 = vsel %vm528, %v526, %v523
        %v530 = vsub.f32 0.0, %v520
        %v531 = vsub.f32 0.0, %v529
        %vm532 = vcmp.lt.f32.partialorder %v530, 5.0
        %vm533 = vcmp.lt.f32.partialorder %v531, 5.0
        %v534 = vsub.f32 %v530, 2.5
        %v535 = vsub.f32 %v531, 2.5
        %v536 = vrsqrt.pop %v530
        %v537 = vmul.f32 %v536, %v530
        %v538 = vmul.f32 %v537, %v536
        %v539 = vmul.f32 0.5, %v538
        %v540 = vsub.f32 1.5, %v539
        %v541 = vmul.f32 %v536, %v540
        %v542 = vmul.f32 %v530, %v541
        %vm543 = vcmp.eq.f32.partialorder %v530, inf
        %v544 = vsel %vm543, %v530, %v542
        %vm545 = vcmp.eq.f32.partialorder %v530, 0.0
        %v546 = vand.u32 %v530, 2147483648
        %v547 = vsel %vm545, %v546, %v544
        %v548 = vrsqrt.pop %v531
        %v549 = vmul.f32 %v548, %v531
        %v550 = vmul.f32 %v549, %v548
        %v551 = vmul.f32 0.5, %v550
        %v552 = vsub.f32 1.5, %v551
        %v553 = vmul.f32 %v548, %v552
        %v554 = vmul.f32 %v531, %v553
        %vm555 = vcmp.eq.f32.partialorder %v531, inf
        %v556 = vsel %vm555, %v531, %v554
        %vm557 = vcmp.eq.f32.partialorder %v531, 0.0
        %v558 = vand.u32 %v531, 2147483648
        %v559 = vsel %vm557, %v558, %v556
        %v560 = vsub.f32 %v547, 3.0
        %v561 = vsub.f32 %v559, 3.0
        %v562 = vsel %vm532, %v534, %v560
        %v563 = vsel %vm533, %v535, %v561
        %v564 = vsel %vm532, 2.8102264e-08, -0.00020021426
        %v565 = vsel %vm533, 2.8102264e-08, -0.00020021426
        %v566 = vsel %vm532, 3.4327394e-07, 0.00010095056
        %v567 = vsel %vm533, 3.4327394e-07, 0.00010095056
        %v568 = vmul.f32 %v564, %v562
        %v569 = vmul.f32 %v565, %v563
        %v570 = vadd.f32 %v566, %v568
        %v571 = vadd.f32 %v567, %v569
        %v572 = vsel %vm532, -3.5233877e-06, 0.0013493432
        %v573 = vsel %vm533, -3.5233877e-06, 0.0013493432
        %v574 = vmul.f32 %v570, %v562
        %v575 = vmul.f32 %v571, %v563
        %v576 = vadd.f32 %v572, %v574
        %v577 = vadd.f32 %v573, %v575
        %v578 = vsel %vm532, -4.3915065e-06, -0.0036734284
        %v579 = vsel %vm533, -4.3915065e-06, -0.0036734284
        %v580 = vmul.f32 %v576, %v562
        %v581 = vmul.f32 %v577, %v563
        %v582 = vadd.f32 %v578, %v580
        %v583 = vadd.f32 %v579, %v581
        %v584 = vsel %vm532, 0.00021858087, 0.0057395077
        %v585 = vsel %vm533, 0.00021858087, 0.0057395077
        %v586 = vmul.f32 %v582, %v562
        %v587 = vmul.f32 %v583, %v563
        %v588 = vadd.f32 %v584, %v586
        %v589 = vadd.f32 %v585, %v587
        %v590 = vsel %vm532, -0.001253725, -0.0076224613
        %v591 = vsel %vm533, -0.001253725, -0.0076224613
        %v592 = vmul.f32 %v588, %v562
        %v593 = vmul.f32 %v589, %v563
        %v594 = vadd.f32 %v590, %v592
        %v595 = vadd.f32 %v591, %v593
        %v596 = vsel %vm532, -0.0041776816, 0.0094388705
        %v597 = vsel %vm533, -0.0041776816, 0.0094388705
        %v598 = vmul.f32 %v594, %v562
        %v599 = vmul.f32 %v595, %v563
        %v600 = vadd.f32 %v596, %v598
        %v601 = vadd.f32 %v597, %v599
        %v602 = vsel %vm532, 0.24664073, 1.001674
        %v603 = vsel %vm533, 0.24664073, 1.001674
        %v604 = vmul.f32 %v600, %v562
        %v605 = vmul.f32 %v601, %v563
        %v606 = vadd.f32 %v602, %v604
        %v607 = vadd.f32 %v603, %v605
        %v608 = vsel %vm532, 1.5014094, 2.8329768
        %v609 = vsel %vm533, 1.5014094, 2.8329768
        %v610 = vmul.f32 %v606, %v562
        %v611 = vmul.f32 %v607, %v563
        %v612 = vadd.f32 %v608, %v610
        %v613 = vadd.f32 %v609, %v611
        %v614 = vand.u32 2147483647, %v506
        %v615 = vand.u32 2147483647, %v507
        %vm616 = vcmp.eq.f32.partialorder %v614, 1.0
        %vm617 = vcmp.eq.f32.partialorder %v615, 1.0
        %v618 = vmul.f32 %v506, inf
        %v619 = vmul.f32 %v507, inf
        %v620 = vmul.f32 %v612, %v506
        %v621 = vmul.f32 %v613, %v507
        %v622 = vsel %vm616, %v618, %v620
        %v623 = vsel %vm617, %v619, %v621
        %v624 = vmul.f32 %v622, 1.4142135
        %v625 = vmul.f32 %v623, 1.4142135
        %s626 = sld [smem:[#allocation3 + %s28]]
        %s627 = sld [smem:[#allocation6 + %s28]]
        %v628 = vld [vmem:[%s4] sm:$0xf]
        %v629 = vld [vmem:[%s361] sm:$0xf]
        %v630 = vld [vmem:[%s365] sm:$0xf]
        %v631 = vstv %s626
        %v632 = vmul.f32 %v631, %v491
        %v633 = vstv %s627
        %v634 = vmul.f32 %v633, %v624
        %v635 = vmul.f32 %v633, %v625
        %v638 = vrot.slane %v635, 4
        %vm639 = vcmask 1043456
        %v640 = vsel %vm639, %v634, %v638
        %v642 = vadd.f32 %v632, %v640
        %644 = vset.pattern.permute.xlu0 0
        %645 = vperm.xlu0 %644, %v629
        %v646 = vpop.permute.xlu0 %645
        %649 = vst [vmem:[#allocation1] ss:$2 sm:$0xff] %v642
        %v650 = vld.sshfl [vmem:[#allocation1] sm:$0xff pattern:$0x75316420]
        %v651 = vld.sshfl [vmem:[#allocation1 + $0x8] sm:$0xff pattern:$0x75316420]
        %vm652 = vcmask 31744
        %v654 = vsel %vm652, %v628, 0
        %v656 = vsel %vm639, %v650, 0
        %v658 = vsel %vm639, %v651, 0
        %660 = vmatpush.msra.mxu0 0.0
        %661 = vmatpush.msra.mxu0 0.0
        %662 = vmatpush.msra.mxu0 0.0
        %663 = vmatpush.msra.mxu0 0.0
        %664 = vmatpush.msra.mxu0 0.0
        %665 = vmatpush.msra.mxu0 0.0
        %666 = vmatpush.msra.mxu0 0.0
        %667 = vmatpush.msra.mxu0 0.0
        %668 = vmatpush.msra.mxu0 0.0
        %669 = vmatpush.msra.mxu0 0.0
        %670 = vmatpush.msra.mxu0 0.0
        %671 = vmatpush.msra.mxu0 0.0
        %672 = vmatpush.msra.mxu0 0.0
        %673 = vmatpush.msra.mxu0 0.0
        %674 = vmatpush.msra.mxu0 0.0
        %675 = vmatpush.msra.mxu0 %v656
        %676 = vmatmul.f32.gmra.mxu0 %v654
        %v677 = vpop.f32.mrf.mxu0
        %v678 = vadd.f32 %v646, %v677
        %679 = vdwg.mxu0
        %680 = vmatpush.msra.mxu0 0.0
        %681 = vmatpush.msra.mxu0 0.0
        %682 = vmatpush.msra.mxu0 0.0
        %683 = vmatpush.msra.mxu0 0.0
        %684 = vmatpush.msra.mxu0 0.0
        %685 = vmatpush.msra.mxu0 0.0
        %686 = vmatpush.msra.mxu0 0.0
        %687 = vmatpush.msra.mxu0 0.0
        %688 = vmatpush.msra.mxu0 0.0
        %689 = vmatpush.msra.mxu0 0.0
        %690 = vmatpush.msra.mxu0 0.0
        %691 = vmatpush.msra.mxu0 0.0
        %692 = vmatpush.msra.mxu0 0.0
        %693 = vmatpush.msra.mxu0 0.0
        %694 = vmatpush.msra.mxu0 0.0
        %695 = vmatpush.msra.mxu0 %v658
        %696 = vmatmul.f32.gmra.mxu0 %v654
        %v697 = vpop.f32.mrf.mxu0
        %v698 = vadd.f32 %v646, %v697
        %699 = vdwg.mxu0
        %v700 = vadd.f32 %v630, 1.0
        %702 = vset.pattern.permute.xlu0 0
        %703 = vperm.xlu0 %702, %v700
        %v704 = vpop.permute.xlu0 %703
        %v706 = vmul.f32 %v678, %v704
        %v707 = vmul.f32 %v698, %v704
        %v708 = vsub.f32 %v624, %v706
        %v709 = vsub.f32 %v625, %v707
        %p710 = scmp.eq.s32.totalorder %s29, 0
        // Predicated region
        $region57: #{tpu_custom_call.1} parent=47 // pred_check
          %p711 = pneg %p710
        $region58: #{tpu_custom_call.1} parent=47 // pred_check_branch
          %713 = sbr.rel (%p711) target = $region60
        $region59: #{tpu_custom_call.1} parent=47 // pred_region
          %714 = vst [vmem:[%s347] sm:$0x1] 0.0
        $region60: #{tpu_custom_call.1} parent=47 // pred_fallthru
          _
        %v715 = vmul.f32 %v708, %v708
        %v717 = vunpack.c.l.s4 1983009808
        %v718 = vunpack.c.0.s8 %v717
        %v719 = vperm.slane %v715, %v718
        %v720 = vmul.f32 %v709, %v709
        %v722 = vunpack.c.l.s4 1983009808
        %v723 = vunpack.c.0.s8 %v722
        %v724 = vperm.slane %v720, %v723
        %v725 = vrot.slane %v724, 4
        %vm726 = vcmask 1047556
        %v727 = vsel %vm726, %v725, %v719
        %v728 = vrot.slane %v719, 4
        %v729 = vsel %vm726, %v724, %v728
        %v731 = vunpack.c.l.s4 1934713408
        %v732 = vunpack.c.0.s8 %v731
        %v733 = vperm.slane %v727, %v732
        %v735 = vunpack.c.l.s4 1934713408
        %v736 = vunpack.c.0.s8 %v735
        %v737 = vperm.slane %v729, %v736
        %v738 = vrot.slane %v733, 4
        %v739 = vsel %vm726, 0.0, %v738
        %v740 = vrot.slane %v737, 4
        %v741 = vsel %vm726, 0.0, %v740
        %vm742 = vcmask 1041408
        %v743 = vsel %vm742, %v733, 0.0
        %v744 = vsel %vm742, %v739, 0.0
        %v745 = vadd.f32 %v743, %v744
        %v746 = vsel %vm742, %v737, 0.0
        %v747 = vadd.f32 %v745, %v746
        %v748 = vsel %vm742, %v741, 0.0
        %v749 = vadd.f32 %v747, %v748
        %v750 = vsel %vm742, %v749, 0.0
        %v751 = vrot.slane %v750, 4
        %v752 = vadd.f32 %v750, %v751
        %v753 = vrot.slane %v752, 2
        %v754 = vadd.f32 %v752, %v753
        %v755 = vrot.slane %v754, 1
        %v756 = vadd.f32 %v754, %v755
        %v757 = vld [vmem:[%s347] sm:$0x1]
        %v758 = vadd.f32 %v757, %v756
        %759 = vst [vmem:[%s347] sm:$0x1] %v758
        %s760 = sand.u32 %s208, 1
        %s761 = scalar_lea.sflag [#allocation4], %s760
        %s762 = sand.u32 %s208, 1
        %s763 = scalar_lea.vmem [#allocation8], %s762
        // Predicated region
        $region61: #{tpu_custom_call.1} parent=47 // pred_check
          %p764 = pneg %p218
        $region62: #{tpu_custom_call.1} parent=47 // pred_check_branch
          %766 = sbr.rel (%p764) target = $region64
        $region63: #{tpu_custom_call.1} parent=47 // pred_region
          %768 = vsyncadd %s761, 0
          %s769 = scalar_lea.hbm %s7, %s28
          %s771 = sshll.u32 %s763, 4
          %s772 = int_to_ptr.vmem [resolvable:$true] %s771
          %s773 = sshll.u32 %s769, 4
          %s774 = int_to_ptr.hbm [resolvable:$true] %s773
          %776 = dma.vmem_to_hbm [thread:$0]  %s772, 16, %s774, %s761
        $region64: #{tpu_custom_call.1} parent=47 // pred_fallthru
          _
      $region48: #{tpu_custom_call.1} parent=5 // pred_fallthru
        _
      %p777 = scmp.le.s32.totalorder 2, %s19
      // Predicated region
      $region65: #{tpu_custom_call.1} parent=5 // pred_check
        %p778 = pneg %p777
      $region66: #{tpu_custom_call.1} parent=5 // pred_check_branch
        %780 = sbr.rel (%p778) target = $region68
      $region67: #{tpu_custom_call.1} parent=5 // pred_region
        %s781 = ssub.s32 %s19, 2
        // Predicated region
        $region69: #{tpu_custom_call.1} parent=67 // pred_check
          %p782 = pneg %p224
        $region70: #{tpu_custom_call.1} parent=67 // pred_check_branch
          %784 = sbr.rel (%p782) target = $region72
        $region71: #{tpu_custom_call.1} parent=67 // pred_region
          %s785 = sand.u32 %s209, 1
          %s786 = scalar_lea.sflag [#allocation4], %s785
          %s787 = sand.u32 %s209, 1
          %s788 = scalar_lea.vmem [#allocation8], %s787
          %790 = dma.done %s786, 16
        $region72: #{tpu_custom_call.1} parent=67 // pred_fallthru
          _
      $region68: #{tpu_custom_call.1} parent=5 // pred_fallthru
        _
    $region6: #{tpu_custom_call.1} parent=1 // loop_footer
      %s23 = sadd.s32 1, %s19
    $region7: #{tpu_custom_call.1} parent=1 // loop_footer_branch
      %18 = sbr.rel target = $region3
    $region8: #{tpu_custom_call.1} parent=1 // loop_exit
      _
    %791 = vsyncpa [#allocation4], 1
    %s792 = scalar_lea.sflag [#allocation4], 1
    %793 = vsyncpa %s792, 1
    %794 = vsyncpa [#allocation5], 1
    %s795 = scalar_lea.sflag [#allocation5], 1
    %796 = vsyncpa %s795, 1
    %797 = vsyncpa [#allocation7], 1

// kernel: tpu_custom_call.1
$region0: #{tpu_custom_call.1}
  #allocation0 [shape = 'u32[]', space=smem, size = 0x4, offset = 0x4, fixed_abs, tag = 'smem constant byte address 0x4 - core index']
  #allocation1 [shape = 'u32[72,128]{1,0:T(1,128)}', space=vmem, size = 0x9000, scoped, tag = 'internal scratch']
  %s0 = inlined_call_operand.hbm [shape: f32[2], index: 0, kind: input, shape index: {}]
  %s1 = inlined_call_operand.hbm [shape: f32[2], index: 1, kind: input, shape index: {}]
  %s2 = inlined_call_operand.vmem [shape: f32[2,4,256], index: 2, kind: input, shape index: {}]
  %s3 = inlined_call_operand.hbm [shape: f32[2,4,256], index: 3, kind: input, shape index: {}]
  %s4 = inlined_call_operand.vmem [shape: f32[4,4], index: 4, kind: input, shape index: {}]
  %s5 = inlined_call_operand.vmem [shape: f32[2,4,1], index: 5, kind: input, shape index: {}]
  %s6 = inlined_call_operand.vmem [shape: f32[2,4,1], index: 6, kind: input, shape index: {}]
  %s7 = inlined_call_operand.hbm [shape: f32[2,1,128], index: 7, kind: output, shape index: {}]
  %s8 = sld [smem:[#allocation0]]
  $region77: #{tpu_custom_call.1} parent=0
    _
  %s10 = ssub.s32 1, %s8
  %s11 = scalar_select 0, %s10, %s8
  $region1: #{tpu_custom_call.1} parent=0
    #allocation2 [shape = 'u8[512]{0}', space=smem, size = 0x200, scoped, tag = 'input window, operand 0, single buffered']
    #allocation3 [shape = 's32[2]{0}', space=sflag, size = 0x8, scoped, tag = 'scoped memory for tpu_custom_call.1']
    #allocation4 [shape = 's32[2]{0}', space=sflag, size = 0x8, scoped, tag = 'scoped memory for tpu_custom_call.1']
    #allocation5 [shape = 's32[2]{0}', space=sflag, size = 0x8, scoped, tag = 'scoped memory for tpu_custom_call.1']
    #allocation6 [shape = 'u8[512]{0}', space=smem, size = 0x200, scoped, tag = 'input window, operand 1, single buffered']
    #allocation7 [shape = 's32[1]{0}', space=sflag, size = 0x4, scoped, tag = 'scoped memory for tpu_custom_call.1']
    #allocation8 [shape = 'u8[8192]{0}', space=vmem, size = 0x2000, scoped, tag = 'input window, operand 3']
    #allocation9 [shape = 'u8[1024]{0}', space=vmem, size = 0x400, scoped, tag = 'output window, operand 0']
    %12 = vsyncpa [#allocation5], 0
    %13 = vsyncpa [#allocation7], 0
    %14 = vsyncpa [#allocation3], 0
    %s15 = scalar_lea.sflag [#allocation3], 1
    %16 = vsyncpa %s15, 0
    %17 = vsyncpa [#allocation4], 0
    %s18 = scalar_lea.sflag [#allocation4], 1
    %19 = vsyncpa %s18, 0
    loop: start=0, step=1, limit=4
    $region2: #{tpu_custom_call.1} parent=1 // loop_pre_header
      _
    $region3: #{tpu_custom_call.1} parent=1 // loop_header
      %s21 = sphi 0, %s25
      %p22 = scmp.ge.s32.totalorder %s21, 4
      %s28 = sphi 0, %s40
      %s29 = sphi 0, %s36
      %s30 = sphi 0, %s28
      %s31 = sphi 0, %s29
      %s32 = sphi 0, %s30
      %s33 = sphi 0, %s31
      %s41 = sphi 0, %s41
      %s43 = sphi 0, %s41
      %s44 = sphi 0, %s43
      %s58 = sphi 0, %s44
      %s62 = sphi 0, %s62
      %s64 = sphi 0, %s62
      %s65 = sphi 0, %s64
      %s79 = sphi 0, %s65
      %s87 = sphi 0, %s89
      %s90 = sphi 0, %s87
      %s91 = sphi 0, %s90
      %s107 = sphi 0, %s91
      %s115 = sphi 0, %s117
      %s118 = sphi 0, %s115
      %s119 = sphi 0, %s118
      %s135 = sphi 0, %s119
      %s139 = sphi 0, %s139
      %s141 = sphi 0, %s139
      %s142 = sphi 0, %s141
      %s156 = sphi 0, %s142
      %s162 = sphi 0, %s164
      %s165 = sphi 0, %s162
      %s166 = sphi 0, %s165
      %s182 = sphi 0, %s166
      %s188 = sphi 0, %s190
      %s191 = sphi 0, %s188
      %s192 = sphi 0, %s191
      %s208 = sphi 0, %s192
      %s214 = sphi 0, %s216
      %s217 = sphi 0, %s214
      %s218 = sphi 0, %s217
      %s234 = sphi 0, %s218
    $region4: #{tpu_custom_call.1} parent=1 // loop_header_branch
      %24 = sbr.rel (%p22) target = $region8
    $region5: #{tpu_custom_call.1} parent=1 // loop_body
      %s26 = ssub.s32 %s21, 1
      %s27 = ssub.s32 %s21, 2
      %s34 = sadd.s32 1, %s29
      %p35 = scmp.ge.s32.totalorder %s34, 1
      %s36 = scalar_select %p35, 0, %s34
      %s37 = sadd.s32 1, %s28
      %s38 = scalar_select %p35, %s37, %s28
      %p39 = scmp.ge.s32.totalorder %s38, 2
      %s40 = scalar_select %p39, 0, %s38
      %s42 = sadd.s32 %s41, 1
      %p45 = scmp.eq.s32.totalorder %s21, 1
      %p46 = scmp.ne.s32.totalorder %s41, %s43
      %p47 = scmp.eq.s32.totalorder %s21, 0
      %p48 = por %p46, %p47
      %p49 = scmp.ne.s32.totalorder %s41, %s43
      %p50 = scmp.eq.s32.totalorder %s26, 1
      %p51 = por %p49, %p50
      %p52 = scmp.ne.s32.totalorder %s43, %s44
      %p53 = scmp.eq.s32.totalorder %s26, 0
      %p54 = por %p52, %p53
      %p55 = scmp.ne.s32.totalorder %s43, %s44
      %p56 = scmp.eq.s32.totalorder %s27, 1
      %p57 = por %p55, %p56
      %p59 = scmp.ne.s32.totalorder %s44, %s58
      %p60 = scmp.eq.s32.totalorder %s27, 0
      %p61 = por %p59, %p60
      %s63 = sadd.s32 %s62, 1
      %p66 = scmp.eq.s32.totalorder %s21, 1
      %p67 = scmp.ne.s32.totalorder %s62, %s64
      %p68 = scmp.eq.s32.totalorder %s21, 0
      %p69 = por %p67, %p68
      %p70 = scmp.ne.s32.totalorder %s62, %s64
      %p71 = scmp.eq.s32.totalorder %s26, 1
      %p72 = por %p70, %p71
      %p73 = scmp.ne.s32.totalorder %s64, %s65
      %p74 = scmp.eq.s32.totalorder %s26, 0
      %p75 = por %p73, %p74
      %p76 = scmp.ne.s32.totalorder %s64, %s65
      %p77 = scmp.eq.s32.totalorder %s27, 1
      %p78 = por %p76, %p77
      %p80 = scmp.ne.s32.totalorder %s65, %s79
      %p81 = scmp.eq.s32.totalorder %s27, 0
      %p82 = por %p80, %p81
      %s83 = ssub.s32 %s28, %s40
      %s84 = ssub.s32 %s29, %s36
      %s85 = sor.u32 %s83, %s84
      %p86 = scmp.eq.s32.totalorder %s85, 0
      %s88 = sadd.s32 %s87, 1
      %s89 = scalar_select %p86, %s87, %s88
      %p92 = pneg %p86
      %p93 = scmp.eq.s32.totalorder %s21, 1
      %p94 = por %p92, %p93
      %p95 = scmp.ne.s32.totalorder %s87, %s90
      %p96 = scmp.eq.s32.totalorder %s21, 0
      %p97 = por %p95, %p96
      %p98 = scmp.ne.s32.totalorder %s87, %s90
      %p99 = scmp.eq.s32.totalorder %s26, 1
      %p100 = por %p98, %p99
      %p101 = scmp.ne.s32.totalorder %s90, %s91
      %p102 = scmp.eq.s32.totalorder %s26, 0
      %p103 = por %p101, %p102
      %p104 = scmp.ne.s32.totalorder %s90, %s91
      %p105 = scmp.eq.s32.totalorder %s27, 1
      %p106 = por %p104, %p105
      %p108 = scmp.ne.s32.totalorder %s91, %s107
      %p109 = scmp.eq.s32.totalorder %s27, 0
      %p110 = por %p108, %p109
      %s111 = ssub.s32 %s28, %s40
      %s112 = ssub.s32 %s29, %s36
      %s113 = sor.u32 %s111, %s112
      %p114 = scmp.eq.s32.totalorder %s113, 0
      %s116 = sadd.s32 %s115, 1
      %s117 = scalar_select %p114, %s115, %s116
      %p120 = pneg %p114
      %p121 = scmp.eq.s32.totalorder %s21, 1
      %p122 = por %p120, %p121
      %p123 = scmp.ne.s32.totalorder %s115, %s118
      %p124 = scmp.eq.s32.totalorder %s21, 0
      %p125 = por %p123, %p124
      %p126 = scmp.ne.s32.totalorder %s115, %s118
      %p127 = scmp.eq.s32.totalorder %s26, 1
      %p128 = por %p126, %p127
      %p129 = scmp.ne.s32.totalorder %s118, %s119
      %p130 = scmp.eq.s32.totalorder %s26, 0
      %p131 = por %p129, %p130
      %p132 = scmp.ne.s32.totalorder %s118, %s119
      %p133 = scmp.eq.s32.totalorder %s27, 1
      %p134 = por %p132, %p133
      %p136 = scmp.ne.s32.totalorder %s119, %s135
      %p137 = scmp.eq.s32.totalorder %s27, 0
      %p138 = por %p136, %p137
      %s140 = sadd.s32 %s139, 1
      %p143 = scmp.eq.s32.totalorder %s21, 1
      %p144 = scmp.ne.s32.totalorder %s139, %s141
      %p145 = scmp.eq.s32.totalorder %s21, 0
      %p146 = por %p144, %p145
      %p147 = scmp.ne.s32.totalorder %s139, %s141
      %p148 = scmp.eq.s32.totalorder %s26, 1
      %p149 = por %p147, %p148
      %p150 = scmp.ne.s32.totalorder %s141, %s142
      %p151 = scmp.eq.s32.totalorder %s26, 0
      %p152 = por %p150, %p151
      %p153 = scmp.ne.s32.totalorder %s141, %s142
      %p154 = scmp.eq.s32.totalorder %s27, 1
      %p155 = por %p153, %p154
      %p157 = scmp.ne.s32.totalorder %s142, %s156
      %p158 = scmp.eq.s32.totalorder %s27, 0
      %p159 = por %p157, %p158
      %s160 = ssub.s32 %s28, %s40
      %p161 = scmp.eq.s32.totalorder %s160, 0
      %s163 = sadd.s32 %s162, 1
      %s164 = scalar_select %p161, %s162, %s163
      %p167 = pneg %p161
      %p168 = scmp.eq.s32.totalorder %s21, 1
      %p169 = por %p167, %p168
      %p170 = scmp.ne.s32.totalorder %s162, %s165
      %p171 = scmp.eq.s32.totalorder %s21, 0
      %p172 = por %p170, %p171
      %p173 = scmp.ne.s32.totalorder %s162, %s165
      %p174 = scmp.eq.s32.totalorder %s26, 1
      %p175 = por %p173, %p174
      %p176 = scmp.ne.s32.totalorder %s165, %s166
      %p177 = scmp.eq.s32.totalorder %s26, 0
      %p178 = por %p176, %p177
      %p179 = scmp.ne.s32.totalorder %s165, %s166
      %p180 = scmp.eq.s32.totalorder %s27, 1
      %p181 = por %p179, %p180
      %p183 = scmp.ne.s32.totalorder %s166, %s182
      %p184 = scmp.eq.s32.totalorder %s27, 0
      %p185 = por %p183, %p184
      %s186 = ssub.s32 %s28, %s40
      %p187 = scmp.eq.s32.totalorder %s186, 0
      %s189 = sadd.s32 %s188, 1
      %s190 = scalar_select %p187, %s188, %s189
      %p193 = pneg %p187
      %p194 = scmp.eq.s32.totalorder %s21, 1
      %p195 = por %p193, %p194
      %p196 = scmp.ne.s32.totalorder %s188, %s191
      %p197 = scmp.eq.s32.totalorder %s21, 0
      %p198 = por %p196, %p197
      %p199 = scmp.ne.s32.totalorder %s188, %s191
      %p200 = scmp.eq.s32.totalorder %s26, 1
      %p201 = por %p199, %p200
      %p202 = scmp.ne.s32.totalorder %s191, %s192
      %p203 = scmp.eq.s32.totalorder %s26, 0
      %p204 = por %p202, %p203
      %p205 = scmp.ne.s32.totalorder %s191, %s192
      %p206 = scmp.eq.s32.totalorder %s27, 1
      %p207 = por %p205, %p206
      %p209 = scmp.ne.s32.totalorder %s192, %s208
      %p210 = scmp.eq.s32.totalorder %s27, 0
      %p211 = por %p209, %p210
      %s212 = ssub.s32 %s28, %s40
      %p213 = scmp.eq.s32.totalorder %s212, 0
      %s215 = sadd.s32 %s214, 1
      %s216 = scalar_select %p213, %s214, %s215
      %p219 = pneg %p213
      %p220 = scmp.eq.s32.totalorder %s21, 1
      %p221 = por %p219, %p220
      %p222 = scmp.ne.s32.totalorder %s214, %s217
      %p223 = scmp.eq.s32.totalorder %s21, 0
      %p224 = por %p222, %p223
      %p225 = scmp.ne.s32.totalorder %s214, %s217
      %p226 = scmp.eq.s32.totalorder %s26, 1
      %p227 = por %p225, %p226
      %p228 = scmp.ne.s32.totalorder %s217, %s218
      %p229 = scmp.eq.s32.totalorder %s26, 0
      %p230 = por %p228, %p229
      %p231 = scmp.ne.s32.totalorder %s217, %s218
      %p232 = scmp.eq.s32.totalorder %s27, 1
      %p233 = por %p231, %p232
      %p235 = scmp.ne.s32.totalorder %s218, %s234
      %p236 = scmp.eq.s32.totalorder %s27, 0
      %p237 = por %p235, %p236
      %p238 = scmp.le.s32.totalorder 1, %s21
      %p239 = scmp.lt.s32.totalorder %s21, 3
      %p240 = pnand %p238, %p239
      %p241 = pneg %p240
      // Predicated region
      $region9: #{tpu_custom_call.1} parent=5 // pred_check
        _
      $region10: #{tpu_custom_call.1} parent=5 // pred_check_branch
        %243 = sbr.rel (%p240) target = $region12
      $region11: #{tpu_custom_call.1} parent=5 // pred_region
        %s244 = ssub.s32 %s21, 1
        // Predicated region
        $region13: #{tpu_custom_call.1} parent=11 // pred_check
          %p245 = pneg %p54
        $region14: #{tpu_custom_call.1} parent=11 // pred_check_branch
          %247 = sbr.rel (%p245) target = $region16
        $region15: #{tpu_custom_call.1} parent=11 // pred_region
          %249 = vsyncadd [#allocation5], 0
          %s251 = sshll.u32 %s0, 4
          %s252 = int_to_ptr.hbm [resolvable:$true] %s251
          %254 = dma.hbm_to_smem %s252, 16, [#allocation2], [#allocation5]
        $region16: #{tpu_custom_call.1} parent=11 // pred_fallthru
          _
        // Predicated region
        $region17: #{tpu_custom_call.1} parent=11 // pred_check
          %p255 = pneg %p75
        $region18: #{tpu_custom_call.1} parent=11 // pred_check_branch
          %257 = sbr.rel (%p255) target = $region20
        $region19: #{tpu_custom_call.1} parent=11 // pred_region
          %259 = vsyncadd [#allocation7], 0
          %s261 = sshll.u32 %s1, 4
          %s262 = int_to_ptr.hbm [resolvable:$true] %s261
          %264 = dma.hbm_to_smem %s262, 16, [#allocation6], [#allocation7]
        $region20: #{tpu_custom_call.1} parent=11 // pred_fallthru
          _
        // Predicated region
        $region21: #{tpu_custom_call.1} parent=11 // pred_check
          %p265 = pneg %p152
        $region22: #{tpu_custom_call.1} parent=11 // pred_check_branch
          %267 = sbr.rel (%p265) target = $region24
        $region23: #{tpu_custom_call.1} parent=11 // pred_region
          _
        $region24: #{tpu_custom_call.1} parent=11 // pred_fallthru
          _
      $region12: #{tpu_custom_call.1} parent=5 // pred_fallthru
        _
      %p268 = scmp.lt.s32.totalorder %s21, 2
      // Predicated region
      $region25: #{tpu_custom_call.1} parent=5 // pred_check
        %p269 = pneg %p268
      $region26: #{tpu_custom_call.1} parent=5 // pred_check_branch
        %271 = sbr.rel (%p269) target = $region28
      $region27: #{tpu_custom_call.1} parent=5 // pred_region
        // Predicated region
        $region29: #{tpu_custom_call.1} parent=27 // pred_check
          %p272 = pneg %p97
        $region30: #{tpu_custom_call.1} parent=27 // pred_check_branch
          %274 = sbr.rel (%p272) target = $region32
        $region31: #{tpu_custom_call.1} parent=27 // pred_region
          %s275 = smul.u32 2, %s29
          %p276 = scmp.lt.s32.totalorder %s28, 1
          %s277 = scalar_select %p276, %s28, 1
          %p278 = scmp.lt.s32.totalorder %s275, 1
          %s279 = scalar_select %p278, %s275, 1
          %s280 = smul.addr %s277, 2
          %s281 = sadd.s32 %s279, %s280
          %s282 = smul.addr %s281, 4
          %s283 = scalar_lea.vmem %s2, %s282
          %s284 = smul.u32 2, %s29
        $region32: #{tpu_custom_call.1} parent=27 // pred_fallthru
          _
        // Predicated region
        $region33: #{tpu_custom_call.1} parent=27 // pred_check
          %p285 = pneg %p125
        $region34: #{tpu_custom_call.1} parent=27 // pred_check_branch
          %287 = sbr.rel (%p285) target = $region36
        $region35: #{tpu_custom_call.1} parent=27 // pred_region
          %s288 = sand.u32 %s115, 1
          %s289 = scalar_lea.sflag [#allocation3], %s288
          %s290 = sand.u32 %s115, 1
          %s291 = smul.addr %s290, 8
          %s292 = scalar_lea.vmem [#allocation8], %s291
          %s293 = smul.u32 2, %s29
          %295 = vsyncadd %s289, 0
          %s296 = smul.addr %s28, 2
          %s297 = sadd.s32 %s293, %s296
          %s298 = smul.addr %s297, 4
          %s299 = scalar_lea.hbm %s3, %s298
          %s301 = sshll.u32 %s299, 4
          %s302 = int_to_ptr.hbm [resolvable:$true] %s301
          %s303 = sshll.u32 %s292, 4
          %s304 = int_to_ptr.vmem [resolvable:$true] %s303
          %306 = dma.hbm_to_vmem [thread:$0]  %s302, 128, %s304, %s289
        $region36: #{tpu_custom_call.1} parent=27 // pred_fallthru
          _
        // Predicated region
        $region37: #{tpu_custom_call.1} parent=27 // pred_check
          %p307 = pneg %p172
        $region38: #{tpu_custom_call.1} parent=27 // pred_check_branch
          %309 = sbr.rel (%p307) target = $region40
        $region39: #{tpu_custom_call.1} parent=27 // pred_region
          %p310 = scmp.lt.s32.totalorder %s28, 1
          %s311 = scalar_select %p310, %s28, 1
          %s312 = smul.addr %s311, 4
          %s313 = scalar_lea.vmem %s5, %s312
        $region40: #{tpu_custom_call.1} parent=27 // pred_fallthru
          _
        // Predicated region
        $region41: #{tpu_custom_call.1} parent=27 // pred_check
          %p314 = pneg %p198
        $region42: #{tpu_custom_call.1} parent=27 // pred_check_branch
          %316 = sbr.rel (%p314) target = $region44
        $region43: #{tpu_custom_call.1} parent=27 // pred_region
          %p317 = scmp.lt.s32.totalorder %s28, 1
          %s318 = scalar_select %p317, %s28, 1
          %s319 = smul.addr %s318, 4
          %s320 = scalar_lea.vmem %s6, %s319
        $region44: #{tpu_custom_call.1} parent=27 // pred_fallthru
          _
      $region28: #{tpu_custom_call.1} parent=5 // pred_fallthru
        _
      %p321 = scmp.le.s32.totalorder 1, %s21
      %p322 = scmp.lt.s32.totalorder %s21, 3
      %p323 = pnand %p321, %p322
      %p324 = pneg %p323
      // Predicated region
      $region45: #{tpu_custom_call.1} parent=5 // pred_check
        _
      $region46: #{tpu_custom_call.1} parent=5 // pred_check_branch
        %326 = sbr.rel (%p323) target = $region48
      $region47: #{tpu_custom_call.1} parent=5 // pred_region
        %s327 = ssub.s32 %s21, 1
        // Predicated region
        $region49: #{tpu_custom_call.1} parent=47 // pred_check
          %p328 = pneg %p54
        $region50: #{tpu_custom_call.1} parent=47 // pred_check_branch
          %330 = sbr.rel (%p328) target = $region52
        $region51: #{tpu_custom_call.1} parent=47 // pred_region
          %332 = dma.done [#allocation5], 16
        $region52: #{tpu_custom_call.1} parent=47 // pred_fallthru
          _
        // Predicated region
        $region53: #{tpu_custom_call.1} parent=47 // pred_check
          %p333 = pneg %p75
        $region54: #{tpu_custom_call.1} parent=47 // pred_check_branch
          %335 = sbr.rel (%p333) target = $region56
        $region55: #{tpu_custom_call.1} parent=47 // pred_region
          %337 = dma.done [#allocation7], 16
        $region56: #{tpu_custom_call.1} parent=47 // pred_fallthru
          _
        %s338 = sand.u32 %s118, 1
        %s339 = scalar_lea.sflag [#allocation3], %s338
        %s340 = sand.u32 %s118, 1
        %s341 = smul.addr %s340, 8
        %s342 = scalar_lea.vmem [#allocation8], %s341
        // Predicated region
        $region57: #{tpu_custom_call.1} parent=47 // pred_check
          %p343 = pneg %p131
        $region58: #{tpu_custom_call.1} parent=47 // pred_check_branch
          %345 = sbr.rel (%p343) target = $region60
        $region59: #{tpu_custom_call.1} parent=47 // pred_region
          %347 = dma.done %s339, 128
        $region60: #{tpu_custom_call.1} parent=47 // pred_fallthru
          _
        %348 = sfence
        %p349 = pneg %p54
        %p350 = pneg %p51
        %p351 = pneg %p75
        %p352 = pneg %p72
        %s353 = smul.u32 2, %s31
        %p354 = scmp.lt.s32.totalorder %s30, 1
        %s355 = scalar_select %p354, %s30, 1
        %p356 = scmp.lt.s32.totalorder %s353, 1
        %s357 = scalar_select %p356, %s353, 1
        %s358 = smul.addr %s355, 2
        %s359 = sadd.s32 %s357, %s358
        %s360 = smul.addr %s359, 4
        %s361 = scalar_lea.vmem %s2, %s360
        %p362 = pneg %p103
        %p363 = pneg %p100
        %s364 = sand.u32 %s118, 1
        %s365 = scalar_lea.sflag [#allocation3], %s364
        %s366 = sand.u32 %s118, 1
        %s367 = smul.addr %s366, 8
        %s368 = scalar_lea.vmem [#allocation8], %s367
        %p369 = pneg %p131
        %p370 = pneg %p128
        %p371 = pneg %p152
        %p372 = pneg %p149
        %p373 = scmp.lt.s32.totalorder %s30, 1
        %s374 = scalar_select %p373, %s30, 1
        %s375 = smul.addr %s374, 4
        %s376 = scalar_lea.vmem %s5, %s375
        %p377 = pneg %p178
        %p378 = pneg %p175
        %p379 = scmp.lt.s32.totalorder %s30, 1
        %s380 = scalar_select %p379, %s30, 1
        %s381 = smul.addr %s380, 4
        %s382 = scalar_lea.vmem %s6, %s381
        %p383 = pneg %p204
        %p384 = pneg %p201
        %p385 = pneg %p230
        %p386 = pneg %p227
        %s387 = sand.u32 %s217, 1
        %s388 = scalar_lea.sflag [#allocation4], %s387
        %s389 = sand.u32 %s217, 1
        %s390 = scalar_lea.vmem [#allocation9], %s389
        %s391 = smul.u32 2, %s31
        %p392 = scmp.lt.s32.totalorder %s30, 1
        %s393 = scalar_select %p392, %s30, 1
        %p394 = scmp.lt.s32.totalorder %s391, 1
        %s395 = scalar_select %p394, %s391, 1
        %s396 = smul.addr %s393, 2
        %s397 = sadd.s32 %s395, %s396
        %s398 = smul.addr %s397, 4
        %s399 = scalar_lea.vmem %s2, %s398
        %s400 = smul.u32 2, %s31
        %s401 = smul.u32 2, %s31
        %p402 = scmp.lt.s32.totalorder %s30, 1
        %s403 = scalar_select %p402, %s30, 1
        %s404 = smul.addr %s403, 4
        %s405 = scalar_lea.vmem %s5, %s404
        %p406 = scmp.lt.s32.totalorder %s30, 1
        %s407 = scalar_select %p406, %s30, 1
        %s408 = smul.addr %s407, 4
        %s409 = scalar_lea.vmem %s6, %s408
        %v410 = vld [vmem:[%s399] sm:$0xff]
        %v411 = vld [vmem:[%s342] sm:$0xff]
        %s412 = sld [smem:[#allocation2 + %s30]]
        %s413 = sld [smem:[#allocation6 + %s30]]
        %v414 = vld [vmem:[%s4] sm:$0xf]
        %v415 = vld [vmem:[%s405] sm:$0xf]
        %v416 = vld [vmem:[%s409] sm:$0xf]
        %v417 = vstv %s412
        %v418 = vmul.f32 %v417, %v410
        %v419 = vstv %s413
        %v420 = vmul.f32 %v419, %v411
        %v421 = vadd.f32 %v418, %v420
        %423 = vset.pattern.permute.xlu0 0
        %424 = vperm.xlu0 %423, %v415
        %v425 = vpop.permute.xlu0 %424
        %428 = vst [vmem:[#allocation1] ss:$2 sm:$0xff] %v421
        %v429 = vld.sshfl [vmem:[#allocation1] sm:$0xff pattern:$0x75316420]
        %v430 = vld.sshfl [vmem:[#allocation1 + $0x8] sm:$0xff pattern:$0x75316420]
        %vm431 = vcmask 31744
        %v433 = vsel %vm431, %v414, 0
        %vm435 = vcmask 1043456
        %v436 = vsel %vm435, %v429, 0
        %v438 = vsel %vm435, %v430, 0
        %440 = vmatpush.msra.mxu0 0.0
        %441 = vmatpush.msra.mxu0 0.0
        %442 = vmatpush.msra.mxu0 0.0
        %443 = vmatpush.msra.mxu0 0.0
        %444 = vmatpush.msra.mxu0 0.0
        %445 = vmatpush.msra.mxu0 0.0
        %446 = vmatpush.msra.mxu0 0.0
        %447 = vmatpush.msra.mxu0 0.0
        %448 = vmatpush.msra.mxu0 0.0
        %449 = vmatpush.msra.mxu0 0.0
        %450 = vmatpush.msra.mxu0 0.0
        %451 = vmatpush.msra.mxu0 0.0
        %452 = vmatpush.msra.mxu0 0.0
        %453 = vmatpush.msra.mxu0 0.0
        %454 = vmatpush.msra.mxu0 0.0
        %455 = vmatpush.msra.mxu0 %v436
        %456 = vmatmul.f32.gmra.mxu0 %v433
        %v457 = vpop.f32.mrf.mxu0
        %v458 = vadd.f32 %v425, %v457
        %459 = vdwg.mxu0
        %460 = vmatpush.msra.mxu0 0.0
        %461 = vmatpush.msra.mxu0 0.0
        %462 = vmatpush.msra.mxu0 0.0
        %463 = vmatpush.msra.mxu0 0.0
        %464 = vmatpush.msra.mxu0 0.0
        %465 = vmatpush.msra.mxu0 0.0
        %466 = vmatpush.msra.mxu0 0.0
        %467 = vmatpush.msra.mxu0 0.0
        %468 = vmatpush.msra.mxu0 0.0
        %469 = vmatpush.msra.mxu0 0.0
        %470 = vmatpush.msra.mxu0 0.0
        %471 = vmatpush.msra.mxu0 0.0
        %472 = vmatpush.msra.mxu0 0.0
        %473 = vmatpush.msra.mxu0 0.0
        %474 = vmatpush.msra.mxu0 0.0
        %475 = vmatpush.msra.mxu0 %v438
        %476 = vmatmul.f32.gmra.mxu0 %v433
        %v477 = vpop.f32.mrf.mxu0
        %v478 = vadd.f32 %v425, %v477
        %479 = vdwg.mxu0
        %v480 = vadd.f32 %v416, 1.0
        %482 = vset.pattern.permute.xlu0 0
        %483 = vperm.xlu0 %482, %v480
        %v484 = vpop.permute.xlu0 %483
        %v486 = vmul.f32 %v458, %v484
        %v487 = vmul.f32 %v478, %v484
        %v490 = vrot.slane %v487, 4
        %v491 = vsel %vm435, %v486, %v490
        %v493 = vsub.f32 %v411, %v491
        %v494 = vmul.f32 %v493, %v493
        %p495 = scmp.eq.s32.totalorder %s31, 0
        // Predicated region
        $region61: #{tpu_custom_call.1} parent=47 // pred_check
          %p496 = pneg %p495
        $region62: #{tpu_custom_call.1} parent=47 // pred_check_branch
          %498 = sbr.rel (%p496) target = $region64
        $region63: #{tpu_custom_call.1} parent=47 // pred_region
          %499 = vst [vmem:[%s390] sm:$0x1] 0.0
        $region64: #{tpu_custom_call.1} parent=47 // pred_fallthru
          _
        %v501 = vrot.slane %v494, 4
        %v503 = vunpack.c.l.s4 1983009808
        %v504 = vunpack.c.0.s8 %v503
        %v505 = vperm.slane %v494, %v504
        %v508 = vunpack.c.l.s4 1983009808
        %v509 = vunpack.c.0.s8 %v508
        %v510 = vperm.slane %v501, %v509
        %v511 = vrot.slane %v510, 4
        %vm512 = vcmask 1047556
        %v513 = vsel %vm512, %v511, %v505
        %v514 = vrot.slane %v505, 4
        %v515 = vsel %vm512, %v510, %v514
        %v517 = vunpack.c.l.s4 1934713408
        %v518 = vunpack.c.0.s8 %v517
        %v519 = vperm.slane %v513, %v518
        %v521 = vunpack.c.l.s4 1934713408
        %v522 = vunpack.c.0.s8 %v521
        %v523 = vperm.slane %v515, %v522
        %v524 = vrot.slane %v519, 4
        %v525 = vsel %vm512, 0.0, %v524
        %v526 = vrot.slane %v523, 4
        %v527 = vsel %vm512, 0.0, %v526
        %vm528 = vcmask 1041408
        %v529 = vsel %vm528, %v519, 0.0
        %v530 = vsel %vm528, %v525, 0.0
        %v531 = vadd.f32 %v529, %v530
        %v532 = vsel %vm528, %v523, 0.0
        %v533 = vadd.f32 %v531, %v532
        %v534 = vsel %vm528, %v527, 0.0
        %v535 = vadd.f32 %v533, %v534
        %v536 = vsel %vm528, %v535, 0.0
        %v537 = vrot.slane %v536, 4
        %v538 = vadd.f32 %v536, %v537
        %v539 = vrot.slane %v538, 2
        %v540 = vadd.f32 %v538, %v539
        %v541 = vrot.slane %v540, 1
        %v542 = vadd.f32 %v540, %v541
        %v543 = vld [vmem:[%s390] sm:$0x1]
        %v544 = vadd.f32 %v543, %v542
        %545 = vst [vmem:[%s390] sm:$0x1] %v544
        %s546 = sand.u32 %s217, 1
        %s547 = scalar_lea.sflag [#allocation4], %s546
        %s548 = sand.u32 %s217, 1
        %s549 = scalar_lea.vmem [#allocation9], %s548
        // Predicated region
        $region65: #{tpu_custom_call.1} parent=47 // pred_check
          %p550 = pneg %p227
        $region66: #{tpu_custom_call.1} parent=47 // pred_check_branch
          %552 = sbr.rel (%p550) target = $region68
        $region67: #{tpu_custom_call.1} parent=47 // pred_region
          %554 = vsyncadd %s547, 0
          %s555 = scalar_lea.hbm %s7, %s30
          %s557 = sshll.u32 %s549, 4
          %s558 = int_to_ptr.vmem [resolvable:$true] %s557
          %s559 = sshll.u32 %s555, 4
          %s560 = int_to_ptr.hbm [resolvable:$true] %s559
          %562 = dma.vmem_to_hbm [thread:$0]  %s558, 16, %s560, %s547
        $region68: #{tpu_custom_call.1} parent=47 // pred_fallthru
          _
      $region48: #{tpu_custom_call.1} parent=5 // pred_fallthru
        _
      %p563 = scmp.le.s32.totalorder 2, %s21
      // Predicated region
      $region69: #{tpu_custom_call.1} parent=5 // pred_check
        %p564 = pneg %p563
      $region70: #{tpu_custom_call.1} parent=5 // pred_check_branch
        %566 = sbr.rel (%p564) target = $region72
      $region71: #{tpu_custom_call.1} parent=5 // pred_region
        %s567 = ssub.s32 %s21, 2
        // Predicated region
        $region73: #{tpu_custom_call.1} parent=71 // pred_check
          %p568 = pneg %p233
        $region74: #{tpu_custom_call.1} parent=71 // pred_check_branch
          %570 = sbr.rel (%p568) target = $region76
        $region75: #{tpu_custom_call.1} parent=71 // pred_region
          %s571 = sand.u32 %s218, 1
          %s572 = scalar_lea.sflag [#allocation4], %s571
          %s573 = sand.u32 %s218, 1
          %s574 = scalar_lea.vmem [#allocation9], %s573
          %576 = dma.done %s572, 16
        $region76: #{tpu_custom_call.1} parent=71 // pred_fallthru
          _
      $region72: #{tpu_custom_call.1} parent=5 // pred_fallthru
        _
    $region6: #{tpu_custom_call.1} parent=1 // loop_footer
      %s25 = sadd.s32 1, %s21
    $region7: #{tpu_custom_call.1} parent=1 // loop_footer_branch
      %20 = sbr.rel target = $region3
    $region8: #{tpu_custom_call.1} parent=1 // loop_exit
      _
    %577 = vsyncpa [#allocation3], 1
    %s578 = scalar_lea.sflag [#allocation3], 1
    %579 = vsyncpa %s578, 1
    %580 = vsyncpa [#allocation4], 1
    %s581 = scalar_lea.sflag [#allocation4], 1
    %582 = vsyncpa %s581, 1
    %583 = vsyncpa [#allocation5], 1
    %s584 = scalar_lea.sflag [#allocation5], 1
    %585 = vsyncpa %s584, 1
    %586 = vsyncpa [#allocation7], 1

</llo_original>
